<compile_context>
chip_gen: v5e
topology: v5e:2x2
jax: 0.10.0
libtpu: 0.0.40
codegen_flags: <defaults>
</compile_context>

<pallas_src>
import functools
import math

import jax
import jax.numpy as jnp
from jax.experimental import pallas as pl
from jax.experimental.pallas import tpu as pltpu

LANE = 128


def _round_up(x, m):
    return (x + m - 1) // m * m


def _sublane(dtype):
    # native sublane tile: 8 rows of 32-bit words -> 16 rows for bf16, 8 for f32
    return 8 * 4 // jnp.dtype(dtype).itemsize


# ---------------------------------------------------------------------------
# Fused per-layer kernel.  grid = (num_layers,) -- strictly sequential.
# Weight packing (folded BN, transposed, zero-padded to [Hp, Hp], bf16):
#   w_ref[0] = user  lin_l^T (multiplies the event->user aggregation)
#   w_ref[1] = user  lin_r^T (multiplies the user root features)
#   w_ref[2] = event lin_l^T (multiplies the user->event aggregation)
#   w_ref[3] = event lin_r^T (multiplies the event root features)
#   b_ref[0] = user folded bias (f32), b_ref[1] = event folded bias (f32)
# ---------------------------------------------------------------------------
def gnn_encoder_layer_kernel(
    h0_u_ref,   # [NUp, Hp] bf16  projected user features   (resident, 1 buffer)
    h0_e_ref,   # [NEp, Hp] bf16  projected event features  (resident, 1 buffer)
    adj_u_ref,  # [NUp, NEp] bf16 mean-normalized event->user adjacency (resident)
    adj_e_ref,  # [NEp, NUp] bf16 mean-normalized user->event adjacency (resident)
    w_ref,      # [4, Hp, Hp] bf16 per-layer conv weights (pipelined over layers)
    b_ref,      # [2, Hp]     f32  per-layer folded biases (pipelined over layers)
    out_u_ref,  # [NUp, Hp] bf16 user state  (VMEM-resident across layers)
    out_e_ref,  # [NEp, Hp] bf16 event state (VMEM-resident across layers)
):
    layer = pl.program_id(0)

    # Seed the resident activation state from the initial projections.
    @pl.when(layer == 0)
    def _():
        out_u_ref[...] = h0_u_ref[...]
        out_e_ref[...] = h0_e_ref[...]

    x_user = out_u_ref[...]    # bf16
    x_event = out_e_ref[...]   # bf16

    # ---- user update: mean-aggregate event features onto users,
    #      lin_l(aggr) + lin_r(root) + folded-BN bias, ReLU.
    aggr_u = jnp.dot(adj_u_ref[...], x_event, preferred_element_type=jnp.float32)
    h_u = (
        jnp.dot(aggr_u.astype(jnp.bfloat16), w_ref[0],
                preferred_element_type=jnp.float32)
        + jnp.dot(x_user, w_ref[1], preferred_element_type=jnp.float32)
        + b_ref[0:1, :]
    )
    x_user_new = jnp.maximum(h_u, 0.0).astype(out_u_ref.dtype)
    out_u_ref[...] = x_user_new

    # ---- event update: uses the freshly updated user features (matches the
    #      reference module's sequential per-layer update).
    aggr_e = jnp.dot(adj_e_ref[...], x_user_new, preferred_element_type=jnp.float32)
    h_e = (
        jnp.dot(aggr_e.astype(jnp.bfloat16), w_ref[2],
                preferred_element_type=jnp.float32)
        + jnp.dot(x_event, w_ref[3], preferred_element_type=jnp.float32)
        + b_ref[1:2, :]
    )
    out_e_ref[...] = jnp.maximum(h_e, 0.0).astype(out_e_ref.dtype)
    # eval-mode dropout is the identity.


# ---------------------------------------------------------------------------
# pallas_call wrapper
# ---------------------------------------------------------------------------
def gnn_encoder_pallas(h0_u, h0_e, adj_u, adj_e, w, b, *, single_buffer=True):
    nup, hp = h0_u.shape
    nep = h0_e.shape[0]
    num_layers = w.shape[0]
    cdt = h0_u.dtype
    itemsize = jnp.dtype(cdt).itemsize

    resident = lambda l: (0, 0)            # constant block index -> fetched once
    per_layer_w = lambda l: (l, 0, 0, 0)   # pipelined along the layer grid axis
    per_layer_b = lambda l: (l, 0, 0)

    res_kw = dict(pipeline_mode=pl.Buffered(1)) if single_buffer else {}
    in_specs = [
        pl.BlockSpec((nup, hp), resident, **res_kw),       # h0 user
        pl.BlockSpec((nep, hp), resident, **res_kw),       # h0 event
        pl.BlockSpec((nup, nep), resident, **res_kw),      # adj event->user
        pl.BlockSpec((nep, nup), resident, **res_kw),      # adj user->event
        pl.BlockSpec((None, 4, hp, hp), per_layer_w),      # packed conv weights
        pl.BlockSpec((None, 2, hp), per_layer_b),          # packed folded biases
    ]
    out_specs = [
        pl.BlockSpec((nup, hp), resident),                 # user state
        pl.BlockSpec((nep, hp), resident),                 # event state
    ]

    # Explicit scoped-VMEM limit from actual block sizes (+ headroom), capped
    # below v7x's 64 MiB physical VMEM.  Default scoped limits (16/32 MiB)
    # would otherwise gate the residency this design assumes on larger graphs.
    resident_bytes = (
        (nup * hp + nep * hp) * itemsize            # h0 inputs
        + (2 * nup * nep) * itemsize                # adjacency pair
        + 2 * (nup * hp + nep * hp) * itemsize      # output state (x2 safety)
    )
    per_layer_bytes = 2 * (4 * hp * hp * itemsize + 2 * hp * 4)  # double-buffered
    temp_bytes = 6 * max(nup, nep) * hp * 4                      # f32 temporaries
    est = resident_bytes + per_layer_bytes + temp_bytes
    vmem_limit = int(min(max(2 * est + (8 << 20), 32 << 20), 48 << 20))

    return pl.pallas_call(
        gnn_encoder_layer_kernel,
        grid_spec=pl.GridSpec(
            grid=(num_layers,), in_specs=in_specs, out_specs=out_specs),
        out_shape=(
            jax.ShapeDtypeStruct((nup, hp), cdt),
            jax.ShapeDtypeStruct((nep, hp), cdt),
        ),
        input_output_aliases={0: 0, 1: 1},   # h0_u -> out_u, h0_e -> out_e
        compiler_params=pltpu.CompilerParams(
            dimension_semantics=("arbitrary",),   # layer recursion is sequential
            vmem_limit_bytes=vmem_limit,
        ),
    )(h0_u, h0_e, adj_u, adj_e, w, b)


# ---------------------------------------------------------------------------
# Parameter init (deterministic, matching PyTorch module shapes / defaults)
# ---------------------------------------------------------------------------
def init_linear(key, in_dim, out_dim, bias=True):
    k1, k2 = jax.random.split(key)
    bound = 1.0 / math.sqrt(in_dim)
    W = jax.random.uniform(k1, (out_dim, in_dim), jnp.float32, -bound, bound)
    b = (jax.random.uniform(k2, (out_dim,), jnp.float32, -bound, bound)
         if bias else jnp.zeros((out_dim,), jnp.float32))
    return W, b


def init_sage(key, hidden):
    # PyG SAGEConv: lin_l(in, out, bias=True) for aggregated neighbors,
    #               lin_r(in, out, bias=False) for the root node.
    k1, k2 = jax.random.split(key)
    Wl, bl = init_linear(k1, hidden, hidden, bias=True)
    Wr, _ = init_linear(k2, hidden, hidden, bias=False)
    return Wl, bl, Wr


def init_bn(hidden):
    # torch defaults: weight=1, bias=0, running_mean=0, running_var=1
    return (jnp.ones((hidden,), jnp.float32), jnp.zeros((hidden,), jnp.float32),
            jnp.zeros((hidden,), jnp.float32), jnp.ones((hidden,), jnp.float32))


def init_gnn_encoder(key, user_dim, event_dim, hidden, num_layers):
    keys = jax.random.split(key, 2 + 2 * num_layers)
    return {
        "user_initial_proj": init_linear(keys[0], user_dim, hidden)
        if user_dim != hidden else None,
        "event_initial_proj": init_linear(keys[1], event_dim, hidden)
        if event_dim != hidden else None,
        "user_convs": [init_sage(keys[2 + i], hidden) for i in range(num_layers)],
        "event_convs": [init_sage(keys[2 + num_layers + i], hidden)
                        for i in range(num_layers)],
        "user_bns": [init_bn(hidden) for _ in range(num_layers)],
        "event_bns": [init_bn(hidden) for _ in range(num_layers)],
    }


# ---------------------------------------------------------------------------
# Parameter prep: fold eval-mode BN into SAGE weights, transpose, zero-pad to
# [Hp, Hp], pack per layer into [L, 4, Hp, Hp] (bf16) + [L, 2, Hp] (f32).
# ---------------------------------------------------------------------------
def _fold_bn_into_sage(conv, bn, hidden, hp, eps=1e-5):
    Wl, bl, Wr = conv                       # torch layout [out, in]
    gamma, beta, rm, rv = bn
    scale = gamma * jax.lax.rsqrt(rv + eps)             # per output channel
    pad = lambda w: jnp.zeros((hp, hp), jnp.float32).at[:hidden, :hidden].set(w)
    wl_t = pad((Wl * scale[:, None]).T)                 # multiplies the aggregation
    wr_t = pad((Wr * scale[:, None]).T)                 # multiplies the root features
    b_f = bl * scale + beta - rm * scale
    b = jnp.zeros((hp,), jnp.float32).at[:hidden].set(b_f)
    return wl_t, wr_t, b


def prepare_gnn_params(params, hidden, compute_dtype=jnp.bfloat16):
    # NOTE: for hidden > 128 on v6e/v7x, padding Hp to a multiple of 256 uses
    # the full 256-wide MXU; at hidden <= 128 keep 128 (full width on v5e).
    hp = _round_up(hidden, LANE)
    num_layers = len(params["user_convs"])
    w_layers, b_layers = [], []
    for i in range(num_layers):
        wl_u, wr_u, b_u = _fold_bn_into_sage(
            params["user_convs"][i], params["user_bns"][i], hidden, hp)
        wl_e, wr_e, b_e = _fold_bn_into_sage(
            params["event_convs"][i], params["event_bns"][i], hidden, hp)
        w_layers.append(jnp.stack([wl_u, wr_u, wl_e, wr_e], axis=0))  # [4,Hp,Hp]
        b_layers.append(jnp.stack([b_u, b_e], axis=0))                # [2,Hp]
    return {
        "proj_u": params["user_initial_proj"],
        "proj_e": params["event_initial_proj"],
        "w": jnp.stack(w_layers).astype(compute_dtype),   # [L, 4, Hp, Hp] bf16
        "b": jnp.stack(b_layers),                          # [L, 2, Hp]     f32
    }


# ---------------------------------------------------------------------------
# Dense mean-aggregation adjacency from edge_index (padded node counts).
# ---------------------------------------------------------------------------
def build_mean_adj(src_idx, dst_idx, n_dst, n_src):
    adj = jnp.zeros((n_dst, n_src), jnp.float32).at[dst_idx, src_idx].add(1.0)
    deg = jnp.sum(adj, axis=1, keepdims=True)
    return adj / jnp.maximum(deg, 1.0)


# ---------------------------------------------------------------------------
# Forward pass (mirrors GNNEncoder.forward, eval mode)
# ---------------------------------------------------------------------------
def gnn_encoder_forward(prep, x_user, x_event, edge_index, *, hidden,
                        single_buffer=True, compute_dtype=jnp.bfloat16):
    n_user = x_user.shape[0]
    n_event = x_event.shape[0]
    hp = prep["w"].shape[-1]
    sub = _sublane(compute_dtype)
    nup = _round_up(n_user, sub)
    nep = _round_up(n_event, sub)

    # Initial projections in plain XLA (touched once -> not worth VMEM residency).
    h_u = x_user if prep["proj_u"] is None else x_user @ prep["proj_u"][0].T + prep["proj_u"][1]
    h_e = x_event if prep["proj_e"] is None else x_event @ prep["proj_e"][0].T + prep["proj_e"][1]

    # Zero-pad to sublane/lane multiples; cast MXU operands to bf16.
    h0_u = jnp.zeros((nup, hp), compute_dtype).at[:n_user, :hidden].set(
        h_u.astype(compute_dtype))
    h0_e = jnp.zeros((nep, hp), compute_dtype).at[:n_event, :hidden].set(
        h_e.astype(compute_dtype))

    # edge_index[0] indexes users, edge_index[1] indexes events.
    u_idx, e_idx = edge_index[0], edge_index[1]
    adj_u = build_mean_adj(e_idx, u_idx, nup, nep).astype(compute_dtype)  # event->user
    adj_e = build_mean_adj(u_idx, e_idx, nep, nup).astype(compute_dtype)  # user->event

    out_u, out_e = gnn_encoder_pallas(h0_u, h0_e, adj_u, adj_e,
                                      prep["w"], prep["b"],
                                      single_buffer=single_buffer)
    return (out_u[:n_user, :hidden].astype(jnp.float32),
            out_e[:n_event, :hidden].astype(jnp.float32))


def gnn_encoder_apply(prep, x_user, x_event, edge_index, hidden):
    """JIT + run; falls back to default double-buffering if pl.Buffered(1)
    is not supported by the installed jax version."""
    last_err = None
    for single_buffer in (True, False):
        fn = jax.jit(functools.partial(gnn_encoder_forward, hidden=hidden,
                                       single_buffer=single_buffer))
        try:
            out = fn(prep, x_user, x_event, edge_index)
            jax.block_until_ready(out)
            return out
        except Exception as e:  # noqa: BLE001 - retry without pipeline_mode
            last_err = e
    raise last_err


# ---------------------------------------------------------------------------
# Pure-JAX f32 reference (eval mode), for tolerance validation of the bf16 path.
# ---------------------------------------------------------------------------
def gnn_encoder_reference(params, x_user, x_event, edge_index, eps=1e-5):
    if params["user_initial_proj"] is not None:
        W, b = params["user_initial_proj"]
        x_user = x_user @ W.T + b
    if params["event_initial_proj"] is not None:
        W, b = params["event_initial_proj"]
        x_event = x_event @ W.T + b
    n_user, n_event = x_user.shape[0], x_event.shape[0]
    u_idx, e_idx = edge_index[0], edge_index[1]
    adj_u = build_mean_adj(e_idx, u_idx, n_user, n_event)
    adj_e = build_mean_adj(u_idx, e_idx, n_event, n_user)

    def bn(x, p):
        gamma, beta, rm, rv = p
        return gamma * (x - rm) * jax.lax.rsqrt(rv + eps) + beta

    for i in range(len(params["user_convs"])):
        Wl, bl, Wr = params["user_convs"][i]
        x_user = jax.nn.relu(bn((adj_u @ x_event) @ Wl.T + bl + x_user @ Wr.T,
                                params["user_bns"][i]))
        Wl, bl, Wr = params["event_convs"][i]
        x_event = jax.nn.relu(bn((adj_e @ x_user) @ Wl.T + bl + x_event @ Wr.T,
                                 params["event_bns"][i]))
    return x_user, x_event


# ---------------------------------------------------------------------------
if __name__ == "__main__":
    key = jax.random.PRNGKey(0)

    USER_FEAT, EVENT_FEAT, HIDDEN = 10, 12, 32
    NUM_LAYERS = 2
    N_USERS, N_EVENTS, N_EDGES = 16, 12, 40

    k_xu, k_xe, k_eu, k_ee, k_params = jax.random.split(key, 5)
    x_user = jax.random.normal(k_xu, (N_USERS, USER_FEAT), jnp.float32)
    x_event = jax.random.normal(k_xe, (N_EVENTS, EVENT_FEAT), jnp.float32)
    edge_index = jnp.stack(
        [jax.random.randint(k_eu, (N_EDGES,), 0, N_USERS),
         jax.random.randint(k_ee, (N_EDGES,), 0, N_EVENTS)], axis=0)

    params = init_gnn_encoder(k_params, USER_FEAT, EVENT_FEAT, HIDDEN, NUM_LAYERS)
    prep = prepare_gnn_params(params, HIDDEN)

    out_user, out_event = gnn_encoder_apply(prep, x_user, x_event, edge_index, HIDDEN)

    assert out_user.shape == (N_USERS, HIDDEN)
    assert out_event.shape == (N_EVENTS, HIDDEN)
    assert bool(jnp.all(jnp.isfinite(out_user)))
    assert bool(jnp.all(jnp.isfinite(out_event)))

    # bf16-MXU / f32-accumulation path vs. pure f32 reference (loose tolerance).
    ref_u, ref_e = gnn_encoder_reference(params, x_user, x_event, edge_index)
    assert bool(jnp.allclose(out_user, ref_u, atol=2e-1, rtol=2e-1))
    assert bool(jnp.allclose(out_event, ref_e, atol=2e-1, rtol=2e-1))

    print("KERNEL_OK")
</pallas_src>

<mosaic_0001>
module attributes {stable_mosaic.version = 11 : i64} {
  func.func @gnn_encoder_layer_kernel(%arg0: i32, %arg1: memref<16x128xbf16, #tpu.memory_space<vmem>>, %arg2: memref<16x128xbf16, #tpu.memory_space<vmem>>, %arg3: memref<16x16xbf16, #tpu.memory_space<vmem>>, %arg4: memref<16x16xbf16, #tpu.memory_space<vmem>>, %arg5: memref<1x4x128x128xbf16, #tpu.memory_space<vmem>>, %arg6: memref<1x2x128xf32, #tpu.memory_space<vmem>>, %arg7: memref<16x128xbf16, #tpu.memory_space<vmem>>, %arg8: memref<16x128xbf16, #tpu.memory_space<vmem>>) attributes {dimension_semantics = [#tpu.dimension_semantics<arbitrary>], iteration_bounds = array<i64: 2>, scalar_prefetch = 0 : i64, scratch_operands = 0 : i64, tpu.core_type = #tpu.core_type<tc>, window_params = [{pipeline_mode = #tpu.pipeline_mode<synchronous>, transform_indices = @transform_0, window_bounds = array<i64: 16, 128>}, {pipeline_mode = #tpu.pipeline_mode<synchronous>, transform_indices = @transform_1, window_bounds = array<i64: 16, 128>}, {pipeline_mode = #tpu.pipeline_mode<synchronous>, transform_indices = @transform_2, window_bounds = array<i64: 16, 16>}, {pipeline_mode = #tpu.pipeline_mode<synchronous>, transform_indices = @transform_3, window_bounds = array<i64: 16, 16>}, {transform_indices = @transform_4, window_bounds = array<i64: 1, 4, 128, 128>}, {transform_indices = @transform_5, window_bounds = array<i64: 1, 2, 128>}, {pipeline_mode = #tpu.pipeline_mode<synchronous>, transform_indices = @transform_6, window_bounds = array<i64: 16, 128>}, {pipeline_mode = #tpu.pipeline_mode<synchronous>, transform_indices = @transform_7, window_bounds = array<i64: 16, 128>}]} {
    %c0_i32 = arith.constant 0 : i32
    %0 = arith.cmpi eq, %arg0, %c0_i32 : i32
    %1 = arith.extui %0 : i1 to i32
    %c0_i32_0 = arith.constant 0 : i32
    %2 = arith.cmpi ne, %1, %c0_i32_0 : i32
    scf.if %2 {
      %c0_38 = arith.constant 0 : index
      %c0_39 = arith.constant 0 : index
      %41 = vector.load %arg1[%c0_38, %c0_39] : memref<16x128xbf16, #tpu.memory_space<vmem>>, vector<16x128xbf16>
      %c0_40 = arith.constant 0 : index
      %c0_41 = arith.constant 0 : index
      %42 = vector.load %arg7[%c0_40, %c0_41] : memref<16x128xbf16, #tpu.memory_space<vmem>>, vector<16x128xbf16>
      tpu.vector_store %arg7[%c0_40, %c0_41], %41 {strides = array<i32>} : memref<16x128xbf16, #tpu.memory_space<vmem>>, vector<16x128xbf16>,
      %c0_42 = arith.constant 0 : index
      %c0_43 = arith.constant 0 : index
      %43 = vector.load %arg2[%c0_42, %c0_43] : memref<16x128xbf16, #tpu.memory_space<vmem>>, vector<16x128xbf16>
      %c0_44 = arith.constant 0 : index
      %c0_45 = arith.constant 0 : index
      %44 = vector.load %arg8[%c0_44, %c0_45] : memref<16x128xbf16, #tpu.memory_space<vmem>>, vector<16x128xbf16>
      tpu.vector_store %arg8[%c0_44, %c0_45], %43 {strides = array<i32>} : memref<16x128xbf16, #tpu.memory_space<vmem>>, vector<16x128xbf16>,
    } else {
    }
    %c0 = arith.constant 0 : index
    %c0_1 = arith.constant 0 : index
    %3 = vector.load %arg7[%c0, %c0_1] : memref<16x128xbf16, #tpu.memory_space<vmem>>, vector<16x128xbf16>
    %c0_2 = arith.constant 0 : index
    %c0_3 = arith.constant 0 : index
    %4 = vector.load %arg8[%c0_2, %c0_3] : memref<16x128xbf16, #tpu.memory_space<vmem>>, vector<16x128xbf16>
    %c0_4 = arith.constant 0 : index
    %c0_5 = arith.constant 0 : index
    %5 = vector.load %arg3[%c0_4, %c0_5] : memref<16x16xbf16, #tpu.memory_space<vmem>>, vector<16x16xbf16>
    %cst = arith.constant dense<0.000000e+00> : vector<16x128xf32>
    %6 = tpu.matmul %5, %4, %cst {dimension_numbers = #tpu.dot_dimension_numbers<[1], [0], [0], [1], [0, 0, 1, 1], [], []>} : vector<16x16xbf16>, vector<16x128xbf16>, vector<16x128xf32> -> vector<16x128xf32>
    %7 = arith.truncf %6 : vector<16x128xf32> to vector<16x128xbf16>
    %c0_6 = arith.constant 0 : index
    %c0_7 = arith.constant 0 : index
    %c0_8 = arith.constant 0 : index
    %c0_9 = arith.constant 0 : index
    %8 = vector.load %arg5[%c0_6, %c0_7, %c0_8, %c0_9] : memref<1x4x128x128xbf16, #tpu.memory_space<vmem>>, vector<1x1x128x128xbf16>
    %9 = vector.shape_cast %8 : vector<1x1x128x128xbf16> to vector<128x128xbf16>
    %cst_10 = arith.constant dense<0.000000e+00> : vector<16x128xf32>
    %10 = tpu.matmul %7, %9, %cst_10 {dimension_numbers = #tpu.dot_dimension_numbers<[1], [0], [0], [1], [0, 0, 1, 1], [], []>} : vector<16x128xbf16>, vector<128x128xbf16>, vector<16x128xf32> -> vector<16x128xf32>
    %c0_11 = arith.constant 0 : index
    %c1 = arith.constant 1 : index
    %c0_12 = arith.constant 0 : index
    %c0_13 = arith.constant 0 : index
    %11 = vector.load %arg5[%c0_11, %c1, %c0_12, %c0_13] : memref<1x4x128x128xbf16, #tpu.memory_space<vmem>>, vector<1x1x128x128xbf16>
    %12 = vector.shape_cast %11 : vector<1x1x128x128xbf16> to vector<128x128xbf16>
    %cst_14 = arith.constant dense<0.000000e+00> : vector<16x128xf32>
    %13 = tpu.matmul %3, %12, %cst_14 {dimension_numbers = #tpu.dot_dimension_numbers<[1], [0], [0], [1], [0, 0, 1, 1], [], []>} : vector<16x128xbf16>, vector<128x128xbf16>, vector<16x128xf32> -> vector<16x128xf32>
    %14 = arith.addf %10, %13 : vector<16x128xf32>
    %c0_15 = arith.constant 0 : index
    %c0_16 = arith.constant 0 : index
    %c0_17 = arith.constant 0 : index
    %15 = vector.load %arg6[%c0_15, %c0_16, %c0_17] : memref<1x2x128xf32, #tpu.memory_space<vmem>>, vector<1x1x128xf32>
    %16 = vector.shape_cast %15 : vector<1x1x128xf32> to vector<1x128xf32>
    %17 = vector.broadcast %16 : vector<1x128xf32> to vector<16x128xf32>
    %18 = arith.addf %14, %17 : vector<16x128xf32>
    %cst_18 = arith.constant 0.000000e+00 : f32
    %19 = vector.broadcast %cst_18 : f32 to vector<16x128xf32>
    %20 = arith.maximumf %18, %19 : vector<16x128xf32>
    %21 = arith.truncf %20 : vector<16x128xf32> to vector<16x128xbf16>
    %c0_19 = arith.constant 0 : index
    %c0_20 = arith.constant 0 : index
    %22 = vector.load %arg7[%c0_19, %c0_20] : memref<16x128xbf16, #tpu.memory_space<vmem>>, vector<16x128xbf16>
    tpu.vector_store %arg7[%c0_19, %c0_20], %21 {strides = array<i32>} : memref<16x128xbf16, #tpu.memory_space<vmem>>, vector<16x128xbf16>,
    %c0_21 = arith.constant 0 : index
    %c0_22 = arith.constant 0 : index
    %23 = vector.load %arg4[%c0_21, %c0_22] : memref<16x16xbf16, #tpu.memory_space<vmem>>, vector<16x16xbf16>
    %cst_23 = arith.constant dense<0.000000e+00> : vector<16x128xf32>
    %24 = tpu.matmul %23, %21, %cst_23 {dimension_numbers = #tpu.dot_dimension_numbers<[1], [0], [0], [1], [0, 0, 1, 1], [], []>} : vector<16x16xbf16>, vector<16x128xbf16>, vector<16x128xf32> -> vector<16x128xf32>
    %25 = arith.truncf %24 : vector<16x128xf32> to vector<16x128xbf16>
    %c0_24 = arith.constant 0 : index
    %c2 = arith.constant 2 : index
    %c0_25 = arith.constant 0 : index
    %c0_26 = arith.constant 0 : index
    %26 = vector.load %arg5[%c0_24, %c2, %c0_25, %c0_26] : memref<1x4x128x128xbf16, #tpu.memory_space<vmem>>, vector<1x1x128x128xbf16>
    %27 = vector.shape_cast %26 : vector<1x1x128x128xbf16> to vector<128x128xbf16>
    %cst_27 = arith.constant dense<0.000000e+00> : vector<16x128xf32>
    %28 = tpu.matmul %25, %27, %cst_27 {dimension_numbers = #tpu.dot_dimension_numbers<[1], [0], [0], [1], [0, 0, 1, 1], [], []>} : vector<16x128xbf16>, vector<128x128xbf16>, vector<16x128xf32> -> vector<16x128xf32>
    %c0_28 = arith.constant 0 : index
    %c3 = arith.constant 3 : index
    %c0_29 = arith.constant 0 : index
    %c0_30 = arith.constant 0 : index
    %29 = vector.load %arg5[%c0_28, %c3, %c0_29, %c0_30] : memref<1x4x128x128xbf16, #tpu.memory_space<vmem>>, vector<1x1x128x128xbf16>
    %30 = vector.shape_cast %29 : vector<1x1x128x128xbf16> to vector<128x128xbf16>
    %cst_31 = arith.constant dense<0.000000e+00> : vector<16x128xf32>
    %31 = tpu.matmul %4, %30, %cst_31 {dimension_numbers = #tpu.dot_dimension_numbers<[1], [0], [0], [1], [0, 0, 1, 1], [], []>} : vector<16x128xbf16>, vector<128x128xbf16>, vector<16x128xf32> -> vector<16x128xf32>
    %32 = arith.addf %28, %31 : vector<16x128xf32>
    %c0_32 = arith.constant 0 : index
    %c1_33 = arith.constant 1 : index
    %c0_34 = arith.constant 0 : index
    %33 = vector.load %arg6[%c0_32, %c1_33, %c0_34] : memref<1x2x128xf32, #tpu.memory_space<vmem>>, vector<1x1x128xf32>
    %34 = vector.shape_cast %33 : vector<1x1x128xf32> to vector<1x128xf32>
    %35 = vector.broadcast %34 : vector<1x128xf32> to vector<16x128xf32>
    %36 = arith.addf %32, %35 : vector<16x128xf32>
    %cst_35 = arith.constant 0.000000e+00 : f32
    %37 = vector.broadcast %cst_35 : f32 to vector<16x128xf32>
    %38 = arith.maximumf %36, %37 : vector<16x128xf32>
    %39 = arith.truncf %38 : vector<16x128xf32> to vector<16x128xbf16>
    %c0_36 = arith.constant 0 : index
    %c0_37 = arith.constant 0 : index
    %40 = vector.load %arg8[%c0_36, %c0_37] : memref<16x128xbf16, #tpu.memory_space<vmem>>, vector<16x128xbf16>
    tpu.vector_store %arg8[%c0_36, %c0_37], %39 {strides = array<i32>} : memref<16x128xbf16, #tpu.memory_space<vmem>>, vector<16x128xbf16>,
    return
  }
  func.func @transform_0(%arg0: i32) -> (i32, i32) {
    %c0_i32 = arith.constant 0 : i32
    %c0_i32_0 = arith.constant 0 : i32
    %c0_i32_1 = arith.constant 0 : i32
    return %c0_i32, %c0_i32_0 : i32, i32
  }
  func.func @transform_1(%arg0: i32) -> (i32, i32) {
    %c0_i32 = arith.constant 0 : i32
    %c0_i32_0 = arith.constant 0 : i32
    %c0_i32_1 = arith.constant 0 : i32
    return %c0_i32, %c0_i32_0 : i32, i32
  }
  func.func @transform_2(%arg0: i32) -> (i32, i32) {
    %c0_i32 = arith.constant 0 : i32
    %c0_i32_0 = arith.constant 0 : i32
    %c0_i32_1 = arith.constant 0 : i32
    return %c0_i32, %c0_i32_0 : i32, i32
  }
  func.func @transform_3(%arg0: i32) -> (i32, i32) {
    %c0_i32 = arith.constant 0 : i32
    %c0_i32_0 = arith.constant 0 : i32
    %c0_i32_1 = arith.constant 0 : i32
    return %c0_i32, %c0_i32_0 : i32, i32
  }
  func.func @transform_4(%arg0: i32) -> (i32, i32, i32, i32) {
    %c0_i32 = arith.constant 0 : i32
    %c0_i32_0 = arith.constant 0 : i32
    %c0_i32_1 = arith.constant 0 : i32
    %c0_i32_2 = arith.constant 0 : i32
    return %arg0, %c0_i32, %c0_i32_0, %c0_i32_1 : i32, i32, i32, i32
  }
  func.func @transform_5(%arg0: i32) -> (i32, i32, i32) {
    %c0_i32 = arith.constant 0 : i32
    %c0_i32_0 = arith.constant 0 : i32
    %c0_i32_1 = arith.constant 0 : i32
    return %arg0, %c0_i32, %c0_i32_0 : i32, i32, i32
  }
  func.func @transform_6(%arg0: i32) -> (i32, i32) {
    %c0_i32 = arith.constant 0 : i32
    %c0_i32_0 = arith.constant 0 : i32
    %c0_i32_1 = arith.constant 0 : i32
    return %c0_i32, %c0_i32_0 : i32, i32
  }
  func.func @transform_7(%arg0: i32) -> (i32, i32) {
    %c0_i32 = arith.constant 0 : i32
    %c0_i32_0 = arith.constant 0 : i32
    %c0_i32_1 = arith.constant 0 : i32
    return %c0_i32, %c0_i32_0 : i32, i32
  }
}

module attributes {stable_mosaic.version = 11 : i64} {
  func.func @gnn_encoder_layer_kernel(%arg0: i32, %arg1: memref<16x128xbf16, #tpu.memory_space<vmem>>, %arg2: memref<16x128xbf16, #tpu.memory_space<vmem>>, %arg3: memref<16x16xbf16, #tpu.memory_space<vmem>>, %arg4: memref<16x16xbf16, #tpu.memory_space<vmem>>, %arg5: memref<1x4x128x128xbf16, #tpu.memory_space<vmem>>, %arg6: memref<1x2x128xf32, #tpu.memory_space<vmem>>, %arg7: memref<16x128xbf16, #tpu.memory_space<vmem>>, %arg8: memref<16x128xbf16, #tpu.memory_space<vmem>>) attributes {dimension_semantics = [#tpu.dimension_semantics<arbitrary>], iteration_bounds = array<i64: 2>, scalar_prefetch = 0 : i64, scratch_operands = 0 : i64, tpu.core_type = #tpu.core_type<tc>, window_params = [{pipeline_mode = #tpu.pipeline_mode<synchronous>, transform_indices = @transform_0, window_bounds = array<i64: 16, 128>}, {pipeline_mode = #tpu.pipeline_mode<synchronous>, transform_indices = @transform_1, window_bounds = array<i64: 16, 128>}, {pipeline_mode = #tpu.pipeline_mode<synchronous>, transform_indices = @transform_2, window_bounds = array<i64: 16, 16>}, {pipeline_mode = #tpu.pipeline_mode<synchronous>, transform_indices = @transform_3, window_bounds = array<i64: 16, 16>}, {transform_indices = @transform_4, window_bounds = array<i64: 1, 4, 128, 128>}, {transform_indices = @transform_5, window_bounds = array<i64: 1, 2, 128>}, {pipeline_mode = #tpu.pipeline_mode<synchronous>, transform_indices = @transform_6, window_bounds = array<i64: 16, 128>}, {pipeline_mode = #tpu.pipeline_mode<synchronous>, transform_indices = @transform_7, window_bounds = array<i64: 16, 128>}]} {
    %c0_i32 = arith.constant 0 : i32
    %0 = arith.cmpi eq, %arg0, %c0_i32 : i32
    %1 = arith.extui %0 : i1 to i32
    %c0_i32_0 = arith.constant 0 : i32
    %2 = arith.cmpi ne, %1, %c0_i32_0 : i32
    scf.if %2 {
      %c0_38 = arith.constant 0 : index
      %c0_39 = arith.constant 0 : index
      %41 = vector.load %arg1[%c0_38, %c0_39] : memref<16x128xbf16, #tpu.memory_space<vmem>>, vector<16x128xbf16>
      %c0_40 = arith.constant 0 : index
      %c0_41 = arith.constant 0 : index
      %42 = vector.load %arg7[%c0_40, %c0_41] : memref<16x128xbf16, #tpu.memory_space<vmem>>, vector<16x128xbf16>
      tpu.vector_store %arg7[%c0_40, %c0_41], %41 {strides = array<i32>} : memref<16x128xbf16, #tpu.memory_space<vmem>>, vector<16x128xbf16>,
      %c0_42 = arith.constant 0 : index
      %c0_43 = arith.constant 0 : index
      %43 = vector.load %arg2[%c0_42, %c0_43] : memref<16x128xbf16, #tpu.memory_space<vmem>>, vector<16x128xbf16>
      %c0_44 = arith.constant 0 : index
      %c0_45 = arith.constant 0 : index
      %44 = vector.load %arg8[%c0_44, %c0_45] : memref<16x128xbf16, #tpu.memory_space<vmem>>, vector<16x128xbf16>
      tpu.vector_store %arg8[%c0_44, %c0_45], %43 {strides = array<i32>} : memref<16x128xbf16, #tpu.memory_space<vmem>>, vector<16x128xbf16>,
    } else {
    }
    %c0 = arith.constant 0 : index
    %c0_1 = arith.constant 0 : index
    %3 = vector.load %arg7[%c0, %c0_1] : memref<16x128xbf16, #tpu.memory_space<vmem>>, vector<16x128xbf16>
    %c0_2 = arith.constant 0 : index
    %c0_3 = arith.constant 0 : index
    %4 = vector.load %arg8[%c0_2, %c0_3] : memref<16x128xbf16, #tpu.memory_space<vmem>>, vector<16x128xbf16>
    %c0_4 = arith.constant 0 : index
    %c0_5 = arith.constant 0 : index
    %5 = vector.load %arg3[%c0_4, %c0_5] : memref<16x16xbf16, #tpu.memory_space<vmem>>, vector<16x16xbf16>
    %cst = arith.constant dense<0.000000e+00> : vector<16x128xf32>
    %6 = tpu.matmul %5, %4, %cst {dimension_numbers = #tpu.dot_dimension_numbers<[1], [0], [0], [1], [0, 0, 1, 1], [], []>} : vector<16x16xbf16>, vector<16x128xbf16>, vector<16x128xf32> -> vector<16x128xf32>
    %7 = arith.truncf %6 : vector<16x128xf32> to vector<16x128xbf16>
    %c0_6 = arith.constant 0 : index
    %c0_7 = arith.constant 0 : index
    %c0_8 = arith.constant 0 : index
    %c0_9 = arith.constant 0 : index
    %8 = vector.load %arg5[%c0_6, %c0_7, %c0_8, %c0_9] : memref<1x4x128x128xbf16, #tpu.memory_space<vmem>>, vector<1x1x128x128xbf16>
    %9 = vector.shape_cast %8 : vector<1x1x128x128xbf16> to vector<128x128xbf16>
    %cst_10 = arith.constant dense<0.000000e+00> : vector<16x128xf32>
    %10 = tpu.matmul %7, %9, %cst_10 {dimension_numbers = #tpu.dot_dimension_numbers<[1], [0], [0], [1], [0, 0, 1, 1], [], []>} : vector<16x128xbf16>, vector<128x128xbf16>, vector<16x128xf32> -> vector<16x128xf32>
    %c0_11 = arith.constant 0 : index
    %c1 = arith.constant 1 : index
    %c0_12 = arith.constant 0 : index
    %c0_13 = arith.constant 0 : index
    %11 = vector.load %arg5[%c0_11, %c1, %c0_12, %c0_13] : memref<1x4x128x128xbf16, #tpu.memory_space<vmem>>, vector<1x1x128x128xbf16>
    %12 = vector.shape_cast %11 : vector<1x1x128x128xbf16> to vector<128x128xbf16>
    %cst_14 = arith.constant dense<0.000000e+00> : vector<16x128xf32>
    %13 = tpu.matmul %3, %12, %cst_14 {dimension_numbers = #tpu.dot_dimension_numbers<[1], [0], [0], [1], [0, 0, 1, 1], [], []>} : vector<16x128xbf16>, vector<128x128xbf16>, vector<16x128xf32> -> vector<16x128xf32>
    %14 = arith.addf %10, %13 : vector<16x128xf32>
    %c0_15 = arith.constant 0 : index
    %c0_16 = arith.constant 0 : index
    %c0_17 = arith.constant 0 : index
    %15 = vector.load %arg6[%c0_15, %c0_16, %c0_17] : memref<1x2x128xf32, #tpu.memory_space<vmem>>, vector<1x1x128xf32>
    %16 = vector.shape_cast %15 : vector<1x1x128xf32> to vector<1x128xf32>
    %17 = vector.broadcast %16 : vector<1x128xf32> to vector<16x128xf32>
    %18 = arith.addf %14, %17 : vector<16x128xf32>
    %cst_18 = arith.constant 0.000000e+00 : f32
    %19 = vector.broadcast %cst_18 : f32 to vector<16x128xf32>
    %20 = arith.maximumf %18, %19 : vector<16x128xf32>
    %21 = arith.truncf %20 : vector<16x128xf32> to vector<16x128xbf16>
    %c0_19 = arith.constant 0 : index
    %c0_20 = arith.constant 0 : index
    %22 = vector.load %arg7[%c0_19, %c0_20] : memref<16x128xbf16, #tpu.memory_space<vmem>>, vector<16x128xbf16>
    tpu.vector_store %arg7[%c0_19, %c0_20], %21 {strides = array<i32>} : memref<16x128xbf16, #tpu.memory_space<vmem>>, vector<16x128xbf16>,
    %c0_21 = arith.constant 0 : index
    %c0_22 = arith.constant 0 : index
    %23 = vector.load %arg4[%c0_21, %c0_22] : memref<16x16xbf16, #tpu.memory_space<vmem>>, vector<16x16xbf16>
    %cst_23 = arith.constant dense<0.000000e+00> : vector<16x128xf32>
    %24 = tpu.matmul %23, %21, %cst_23 {dimension_numbers = #tpu.dot_dimension_numbers<[1], [0], [0], [1], [0, 0, 1, 1], [], []>} : vector<16x16xbf16>, vector<16x128xbf16>, vector<16x128xf32> -> vector<16x128xf32>
    %25 = arith.truncf %24 : vector<16x128xf32> to vector<16x128xbf16>
    %c0_24 = arith.constant 0 : index
    %c2 = arith.constant 2 : index
    %c0_25 = arith.constant 0 : index
    %c0_26 = arith.constant 0 : index
    %26 = vector.load %arg5[%c0_24, %c2, %c0_25, %c0_26] : memref<1x4x128x128xbf16, #tpu.memory_space<vmem>>, vector<1x1x128x128xbf16>
    %27 = vector.shape_cast %26 : vector<1x1x128x128xbf16> to vector<128x128xbf16>
    %cst_27 = arith.constant dense<0.000000e+00> : vector<16x128xf32>
    %28 = tpu.matmul %25, %27, %cst_27 {dimension_numbers = #tpu.dot_dimension_numbers<[1], [0], [0], [1], [0, 0, 1, 1], [], []>} : vector<16x128xbf16>, vector<128x128xbf16>, vector<16x128xf32> -> vector<16x128xf32>
    %c0_28 = arith.constant 0 : index
    %c3 = arith.constant 3 : index
    %c0_29 = arith.constant 0 : index
    %c0_30 = arith.constant 0 : index
    %29 = vector.load %arg5[%c0_28, %c3, %c0_29, %c0_30] : memref<1x4x128x128xbf16, #tpu.memory_space<vmem>>, vector<1x1x128x128xbf16>
    %30 = vector.shape_cast %29 : vector<1x1x128x128xbf16> to vector<128x128xbf16>
    %cst_31 = arith.constant dense<0.000000e+00> : vector<16x128xf32>
    %31 = tpu.matmul %4, %30, %cst_31 {dimension_numbers = #tpu.dot_dimension_numbers<[1], [0], [0], [1], [0, 0, 1, 1], [], []>} : vector<16x128xbf16>, vector<128x128xbf16>, vector<16x128xf32> -> vector<16x128xf32>
    %32 = arith.addf %28, %31 : vector<16x128xf32>
    %c0_32 = arith.constant 0 : index
    %c1_33 = arith.constant 1 : index
    %c0_34 = arith.constant 0 : index
    %33 = vector.load %arg6[%c0_32, %c1_33, %c0_34] : memref<1x2x128xf32, #tpu.memory_space<vmem>>, vector<1x1x128xf32>
    %34 = vector.shape_cast %33 : vector<1x1x128xf32> to vector<1x128xf32>
    %35 = vector.broadcast %34 : vector<1x128xf32> to vector<16x128xf32>
    %36 = arith.addf %32, %35 : vector<16x128xf32>
    %cst_35 = arith.constant 0.000000e+00 : f32
    %37 = vector.broadcast %cst_35 : f32 to vector<16x128xf32>
    %38 = arith.maximumf %36, %37 : vector<16x128xf32>
    %39 = arith.truncf %38 : vector<16x128xf32> to vector<16x128xbf16>
    %c0_36 = arith.constant 0 : index
    %c0_37 = arith.constant 0 : index
    %40 = vector.load %arg8[%c0_36, %c0_37] : memref<16x128xbf16, #tpu.memory_space<vmem>>, vector<16x128xbf16>
    tpu.vector_store %arg8[%c0_36, %c0_37], %39 {strides = array<i32>} : memref<16x128xbf16, #tpu.memory_space<vmem>>, vector<16x128xbf16>,
    return
  }
  func.func @transform_0(%arg0: i32) -> (i32, i32) {
    %c0_i32 = arith.constant 0 : i32
    %c0_i32_0 = arith.constant 0 : i32
    %c0_i32_1 = arith.constant 0 : i32
    return %c0_i32, %c0_i32_0 : i32, i32
  }
  func.func @transform_1(%arg0: i32) -> (i32, i32) {
    %c0_i32 = arith.constant 0 : i32
    %c0_i32_0 = arith.constant 0 : i32
    %c0_i32_1 = arith.constant 0 : i32
    return %c0_i32, %c0_i32_0 : i32, i32
  }
  func.func @transform_2(%arg0: i32) -> (i32, i32) {
    %c0_i32 = arith.constant 0 : i32
    %c0_i32_0 = arith.constant 0 : i32
    %c0_i32_1 = arith.constant 0 : i32
    return %c0_i32, %c0_i32_0 : i32, i32
  }
  func.func @transform_3(%arg0: i32) -> (i32, i32) {
    %c0_i32 = arith.constant 0 : i32
    %c0_i32_0 = arith.constant 0 : i32
    %c0_i32_1 = arith.constant 0 : i32
    return %c0_i32, %c0_i32_0 : i32, i32
  }
  func.func @transform_4(%arg0: i32) -> (i32, i32, i32, i32) {
    %c0_i32 = arith.constant 0 : i32
    %c0_i32_0 = arith.constant 0 : i32
    %c0_i32_1 = arith.constant 0 : i32
    %c0_i32_2 = arith.constant 0 : i32
    return %arg0, %c0_i32, %c0_i32_0, %c0_i32_1 : i32, i32, i32, i32
  }
  func.func @transform_5(%arg0: i32) -> (i32, i32, i32) {
    %c0_i32 = arith.constant 0 : i32
    %c0_i32_0 = arith.constant 0 : i32
    %c0_i32_1 = arith.constant 0 : i32
    return %arg0, %c0_i32, %c0_i32_0 : i32, i32, i32
  }
  func.func @transform_6(%arg0: i32) -> (i32, i32) {
    %c0_i32 = arith.constant 0 : i32
    %c0_i32_0 = arith.constant 0 : i32
    %c0_i32_1 = arith.constant 0 : i32
    return %c0_i32, %c0_i32_0 : i32, i32
  }
  func.func @transform_7(%arg0: i32) -> (i32, i32) {
    %c0_i32 = arith.constant 0 : i32
    %c0_i32_0 = arith.constant 0 : i32
    %c0_i32_1 = arith.constant 0 : i32
    return %c0_i32, %c0_i32_0 : i32, i32
  }
}

</mosaic_0001>

<llo_original>
// kernel: gnn_encoder_forward.1
$region0: #{gnn_encoder_forward.1}
  #allocation0 [shape = 'u32[]', space=smem, size = 0x4, offset = 0x4, fixed_abs, tag = 'smem constant byte address 0x4 - core index']
  #allocation1 [shape = 'u32[72,128]{1,0:T(1,128)}', space=vmem, size = 0x9000, scoped, tag = 'internal scratch']
  %s0 = inlined_call_operand.vmem [shape: bf16[16,128], index: 0, kind: input, shape index: {}, may-alias: {0,6}]
  %s1 = inlined_call_operand.vmem [shape: bf16[16,128], index: 1, kind: input, shape index: {}, may-alias: {1,7}]
  %s2 = inlined_call_operand.vmem [shape: bf16[16,16], index: 2, kind: input, shape index: {}]
  %s3 = inlined_call_operand.vmem [shape: bf16[16,16], index: 3, kind: input, shape index: {}]
  %s4 = inlined_call_operand.vmem [shape: bf16[2,4,128,128], index: 4, kind: input, shape index: {}]
  %s5 = inlined_call_operand.vmem [shape: f32[2,2,128], index: 5, kind: input, shape index: {}]
  %s6 = inlined_call_operand.vmem [shape: bf16[16,128], index: 6, kind: output, shape index: {0}, may-alias: {0,6}]
  %s7 = inlined_call_operand.vmem [shape: bf16[16,128], index: 7, kind: output, shape index: {1}, may-alias: {1,7}]
  %8 = xla_tuple %s6, %s7
  %s9 = sld [smem:[#allocation0]]
  $region69: #{gnn_encoder_forward.1} parent=0
    _
  %s11 = ssub.s32 1, %s9
  %s12 = scalar_select 0, %s11, %s9
  loop: start=0, step=1, limit=4
  $region2: #{gnn_encoder_forward.1} parent=0 // loop_pre_header
    _
  $region3: #{gnn_encoder_forward.1} parent=0 // loop_header
    %s14 = sphi 0, %s18
    %p15 = scmp.ge.s32.totalorder %s14, 4
    %s22 = sphi 0, %s22
    %s24 = sphi 0, %s22
    %s25 = sphi 0, %s24
    %s39 = sphi 0, %s25
    %s43 = sphi 0, %s43
    %s45 = sphi 0, %s43
    %s46 = sphi 0, %s45
    %s60 = sphi 0, %s46
    %s64 = sphi 0, %s64
    %s66 = sphi 0, %s64
    %s67 = sphi 0, %s66
    %s81 = sphi 0, %s67
    %s85 = sphi 0, %s85
    %s87 = sphi 0, %s85
    %s88 = sphi 0, %s87
    %s102 = sphi 0, %s88
    %s108 = sphi 0, %s110
    %s111 = sphi 0, %s108
    %s112 = sphi 0, %s111
    %s128 = sphi 0, %s112
    %s134 = sphi 0, %s136
    %s137 = sphi 0, %s134
    %s138 = sphi 0, %s137
    %s154 = sphi 0, %s138
    %s158 = sphi 0, %s158
    %s160 = sphi 0, %s158
    %s161 = sphi 0, %s160
    %s175 = sphi 0, %s161
    %s179 = sphi 0, %s179
    %s181 = sphi 0, %s179
    %s182 = sphi 0, %s181
    %s196 = sphi 0, %s182
  $region4: #{gnn_encoder_forward.1} parent=0 // loop_header_branch
    %17 = sbr.rel (%p15) target = $region8
  $region5: #{gnn_encoder_forward.1} parent=0 // loop_body
    %s19 = ssub.s32 %s14, 1
    %s20 = ssub.s32 %s14, 2
    %s21 = sadd.s32 %s14, 1
    %s23 = sadd.s32 %s22, 1
    %p26 = scmp.eq.s32.totalorder %s14, 1
    %p27 = scmp.ne.s32.totalorder %s22, %s24
    %p28 = scmp.eq.s32.totalorder %s14, 0
    %p29 = por %p27, %p28
    %p30 = scmp.ne.s32.totalorder %s22, %s24
    %p31 = scmp.eq.s32.totalorder %s19, 1
    %p32 = por %p30, %p31
    %p33 = scmp.ne.s32.totalorder %s24, %s25
    %p34 = scmp.eq.s32.totalorder %s19, 0
    %p35 = por %p33, %p34
    %p36 = scmp.ne.s32.totalorder %s24, %s25
    %p37 = scmp.eq.s32.totalorder %s20, 1
    %p38 = por %p36, %p37
    %p40 = scmp.ne.s32.totalorder %s25, %s39
    %p41 = scmp.eq.s32.totalorder %s20, 0
    %p42 = por %p40, %p41
    %s44 = sadd.s32 %s43, 1
    %p47 = scmp.eq.s32.totalorder %s14, 1
    %p48 = scmp.ne.s32.totalorder %s43, %s45
    %p49 = scmp.eq.s32.totalorder %s14, 0
    %p50 = por %p48, %p49
    %p51 = scmp.ne.s32.totalorder %s43, %s45
    %p52 = scmp.eq.s32.totalorder %s19, 1
    %p53 = por %p51, %p52
    %p54 = scmp.ne.s32.totalorder %s45, %s46
    %p55 = scmp.eq.s32.totalorder %s19, 0
    %p56 = por %p54, %p55
    %p57 = scmp.ne.s32.totalorder %s45, %s46
    %p58 = scmp.eq.s32.totalorder %s20, 1
    %p59 = por %p57, %p58
    %p61 = scmp.ne.s32.totalorder %s46, %s60
    %p62 = scmp.eq.s32.totalorder %s20, 0
    %p63 = por %p61, %p62
    %s65 = sadd.s32 %s64, 1
    %p68 = scmp.eq.s32.totalorder %s14, 1
    %p69 = scmp.ne.s32.totalorder %s64, %s66
    %p70 = scmp.eq.s32.totalorder %s14, 0
    %p71 = por %p69, %p70
    %p72 = scmp.ne.s32.totalorder %s64, %s66
    %p73 = scmp.eq.s32.totalorder %s19, 1
    %p74 = por %p72, %p73
    %p75 = scmp.ne.s32.totalorder %s66, %s67
    %p76 = scmp.eq.s32.totalorder %s19, 0
    %p77 = por %p75, %p76
    %p78 = scmp.ne.s32.totalorder %s66, %s67
    %p79 = scmp.eq.s32.totalorder %s20, 1
    %p80 = por %p78, %p79
    %p82 = scmp.ne.s32.totalorder %s67, %s81
    %p83 = scmp.eq.s32.totalorder %s20, 0
    %p84 = por %p82, %p83
    %s86 = sadd.s32 %s85, 1
    %p89 = scmp.eq.s32.totalorder %s14, 1
    %p90 = scmp.ne.s32.totalorder %s85, %s87
    %p91 = scmp.eq.s32.totalorder %s14, 0
    %p92 = por %p90, %p91
    %p93 = scmp.ne.s32.totalorder %s85, %s87
    %p94 = scmp.eq.s32.totalorder %s19, 1
    %p95 = por %p93, %p94
    %p96 = scmp.ne.s32.totalorder %s87, %s88
    %p97 = scmp.eq.s32.totalorder %s19, 0
    %p98 = por %p96, %p97
    %p99 = scmp.ne.s32.totalorder %s87, %s88
    %p100 = scmp.eq.s32.totalorder %s20, 1
    %p101 = por %p99, %p100
    %p103 = scmp.ne.s32.totalorder %s88, %s102
    %p104 = scmp.eq.s32.totalorder %s20, 0
    %p105 = por %p103, %p104
    %s106 = ssub.s32 %s14, %s21
    %p107 = scmp.eq.s32.totalorder %s106, 0
    %s109 = sadd.s32 %s108, 1
    %s110 = scalar_select %p107, %s108, %s109
    %p113 = pneg %p107
    %p114 = scmp.eq.s32.totalorder %s14, 1
    %p115 = por %p113, %p114
    %p116 = scmp.ne.s32.totalorder %s108, %s111
    %p117 = scmp.eq.s32.totalorder %s14, 0
    %p118 = por %p116, %p117
    %p119 = scmp.ne.s32.totalorder %s108, %s111
    %p120 = scmp.eq.s32.totalorder %s19, 1
    %p121 = por %p119, %p120
    %p122 = scmp.ne.s32.totalorder %s111, %s112
    %p123 = scmp.eq.s32.totalorder %s19, 0
    %p124 = por %p122, %p123
    %p125 = scmp.ne.s32.totalorder %s111, %s112
    %p126 = scmp.eq.s32.totalorder %s20, 1
    %p127 = por %p125, %p126
    %p129 = scmp.ne.s32.totalorder %s112, %s128
    %p130 = scmp.eq.s32.totalorder %s20, 0
    %p131 = por %p129, %p130
    %s132 = ssub.s32 %s14, %s21
    %p133 = scmp.eq.s32.totalorder %s132, 0
    %s135 = sadd.s32 %s134, 1
    %s136 = scalar_select %p133, %s134, %s135
    %p139 = pneg %p133
    %p140 = scmp.eq.s32.totalorder %s14, 1
    %p141 = por %p139, %p140
    %p142 = scmp.ne.s32.totalorder %s134, %s137
    %p143 = scmp.eq.s32.totalorder %s14, 0
    %p144 = por %p142, %p143
    %p145 = scmp.ne.s32.totalorder %s134, %s137
    %p146 = scmp.eq.s32.totalorder %s19, 1
    %p147 = por %p145, %p146
    %p148 = scmp.ne.s32.totalorder %s137, %s138
    %p149 = scmp.eq.s32.totalorder %s19, 0
    %p150 = por %p148, %p149
    %p151 = scmp.ne.s32.totalorder %s137, %s138
    %p152 = scmp.eq.s32.totalorder %s20, 1
    %p153 = por %p151, %p152
    %p155 = scmp.ne.s32.totalorder %s138, %s154
    %p156 = scmp.eq.s32.totalorder %s20, 0
    %p157 = por %p155, %p156
    %s159 = sadd.s32 %s158, 1
    %p162 = scmp.eq.s32.totalorder %s14, 1
    %p163 = scmp.ne.s32.totalorder %s158, %s160
    %p164 = scmp.eq.s32.totalorder %s14, 0
    %p165 = por %p163, %p164
    %p166 = scmp.ne.s32.totalorder %s158, %s160
    %p167 = scmp.eq.s32.totalorder %s19, 1
    %p168 = por %p166, %p167
    %p169 = scmp.ne.s32.totalorder %s160, %s161
    %p170 = scmp.eq.s32.totalorder %s19, 0
    %p171 = por %p169, %p170
    %p172 = scmp.ne.s32.totalorder %s160, %s161
    %p173 = scmp.eq.s32.totalorder %s20, 1
    %p174 = por %p172, %p173
    %p176 = scmp.ne.s32.totalorder %s161, %s175
    %p177 = scmp.eq.s32.totalorder %s20, 0
    %p178 = por %p176, %p177
    %s180 = sadd.s32 %s179, 1
    %p183 = scmp.eq.s32.totalorder %s14, 1
    %p184 = scmp.ne.s32.totalorder %s179, %s181
    %p185 = scmp.eq.s32.totalorder %s14, 0
    %p186 = por %p184, %p185
    %p187 = scmp.ne.s32.totalorder %s179, %s181
    %p188 = scmp.eq.s32.totalorder %s19, 1
    %p189 = por %p187, %p188
    %p190 = scmp.ne.s32.totalorder %s181, %s182
    %p191 = scmp.eq.s32.totalorder %s19, 0
    %p192 = por %p190, %p191
    %p193 = scmp.ne.s32.totalorder %s181, %s182
    %p194 = scmp.eq.s32.totalorder %s20, 1
    %p195 = por %p193, %p194
    %p197 = scmp.ne.s32.totalorder %s182, %s196
    %p198 = scmp.eq.s32.totalorder %s20, 0
    %p199 = por %p197, %p198
    %p200 = scmp.le.s32.totalorder 1, %s14
    %p201 = scmp.lt.s32.totalorder %s14, 3
    %p202 = pnand %p200, %p201
    %p203 = pneg %p202
    // Predicated region
    $region9: #{gnn_encoder_forward.1} parent=5 // pred_check
      _
    $region10: #{gnn_encoder_forward.1} parent=5 // pred_check_branch
      %205 = sbr.rel (%p202) target = $region12
    $region11: #{gnn_encoder_forward.1} parent=5 // pred_region
      %s206 = ssub.s32 %s14, 1
      // Predicated region
      $region13: #{gnn_encoder_forward.1} parent=11 // pred_check
        %p207 = pneg %p35
      $region14: #{gnn_encoder_forward.1} parent=11 // pred_check_branch
        %209 = sbr.rel (%p207) target = $region16
      $region15: #{gnn_encoder_forward.1} parent=11 // pred_region
        _
      $region16: #{gnn_encoder_forward.1} parent=11 // pred_fallthru
        _
      // Predicated region
      $region17: #{gnn_encoder_forward.1} parent=11 // pred_check
        %p210 = pneg %p56
      $region18: #{gnn_encoder_forward.1} parent=11 // pred_check_branch
        %212 = sbr.rel (%p210) target = $region20
      $region19: #{gnn_encoder_forward.1} parent=11 // pred_region
        _
      $region20: #{gnn_encoder_forward.1} parent=11 // pred_fallthru
        _
      // Predicated region
      $region21: #{gnn_encoder_forward.1} parent=11 // pred_check
        %p213 = pneg %p77
      $region22: #{gnn_encoder_forward.1} parent=11 // pred_check_branch
        %215 = sbr.rel (%p213) target = $region24
      $region23: #{gnn_encoder_forward.1} parent=11 // pred_region
        _
      $region24: #{gnn_encoder_forward.1} parent=11 // pred_fallthru
        _
      // Predicated region
      $region25: #{gnn_encoder_forward.1} parent=11 // pred_check
        %p216 = pneg %p98
      $region26: #{gnn_encoder_forward.1} parent=11 // pred_check_branch
        %218 = sbr.rel (%p216) target = $region28
      $region27: #{gnn_encoder_forward.1} parent=11 // pred_region
        _
      $region28: #{gnn_encoder_forward.1} parent=11 // pred_fallthru
        _
    $region12: #{gnn_encoder_forward.1} parent=5 // pred_fallthru
      _
    %p219 = scmp.lt.s32.totalorder %s14, 2
    // Predicated region
    $region29: #{gnn_encoder_forward.1} parent=5 // pred_check
      %p220 = pneg %p219
    $region30: #{gnn_encoder_forward.1} parent=5 // pred_check_branch
      %222 = sbr.rel (%p220) target = $region32
    $region31: #{gnn_encoder_forward.1} parent=5 // pred_region
      // Predicated region
      $region33: #{gnn_encoder_forward.1} parent=31 // pred_check
        %p223 = pneg %p118
      $region34: #{gnn_encoder_forward.1} parent=31 // pred_check_branch
        %225 = sbr.rel (%p223) target = $region36
      $region35: #{gnn_encoder_forward.1} parent=31 // pred_region
        %p226 = scmp.lt.s32.totalorder %s14, 1
        %s227 = scalar_select %p226, %s14, 1
        %s228 = smul.addr %s227, 64
        %s229 = smul.addr %s228, 4
        %s230 = scalar_lea.vmem %s4, %s229
      $region36: #{gnn_encoder_forward.1} parent=31 // pred_fallthru
        _
      // Predicated region
      $region37: #{gnn_encoder_forward.1} parent=31 // pred_check
        %p231 = pneg %p144
      $region38: #{gnn_encoder_forward.1} parent=31 // pred_check_branch
        %233 = sbr.rel (%p231) target = $region40
      $region39: #{gnn_encoder_forward.1} parent=31 // pred_region
        %p234 = scmp.lt.s32.totalorder %s14, 1
        %s235 = scalar_select %p234, %s14, 1
        %s236 = smul.addr %s235, 2
        %s237 = scalar_lea.vmem %s5, %s236
      $region40: #{gnn_encoder_forward.1} parent=31 // pred_fallthru
        _
    $region32: #{gnn_encoder_forward.1} parent=5 // pred_fallthru
      _
    %p238 = scmp.le.s32.totalorder 1, %s14
    %p239 = scmp.lt.s32.totalorder %s14, 3
    %p240 = pnand %p238, %p239
    %p241 = pneg %p240
    // Predicated region
    $region41: #{gnn_encoder_forward.1} parent=5 // pred_check
      _
    $region42: #{gnn_encoder_forward.1} parent=5 // pred_check_branch
      %243 = sbr.rel (%p240) target = $region44
    $region43: #{gnn_encoder_forward.1} parent=5 // pred_region
      %s244 = ssub.s32 %s14, 1
      %p245 = pneg %p35
      %p246 = pneg %p32
      %p247 = pneg %p56
      %p248 = pneg %p53
      %p249 = pneg %p77
      %p250 = pneg %p74
      %p251 = pneg %p98
      %p252 = pneg %p95
      %p253 = scmp.lt.s32.totalorder %s19, 1
      %s254 = scalar_select %p253, %s19, 1
      %s255 = smul.addr %s254, 64
      %s256 = smul.addr %s255, 4
      %s257 = scalar_lea.vmem %s4, %s256
      %p258 = pneg %p124
      %p259 = pneg %p121
      %p260 = scmp.lt.s32.totalorder %s19, 1
      %s261 = scalar_select %p260, %s19, 1
      %s262 = smul.addr %s261, 2
      %s263 = scalar_lea.vmem %s5, %s262
      %p264 = pneg %p150
      %p265 = pneg %p147
      %p266 = pneg %p171
      %p267 = pneg %p168
      %p268 = pneg %p192
      %p269 = pneg %p189
      %p270 = scmp.lt.s32.totalorder %s19, 1
      %s271 = scalar_select %p270, %s19, 1
      %s272 = smul.addr %s271, 64
      %s273 = smul.addr %s272, 4
      %s274 = scalar_lea.vmem %s4, %s273
      %p275 = scmp.lt.s32.totalorder %s19, 1
      %s276 = scalar_select %p275, %s19, 1
      %s277 = smul.addr %s276, 2
      %s278 = scalar_lea.vmem %s5, %s277
      %p280 = scmp.eq.s32.totalorder %s19, 0
      // Predicated region
      $region45: #{gnn_encoder_forward.1} parent=43 // pred_check
        %p281 = pneg %p280
      $region46: #{gnn_encoder_forward.1} parent=43 // pred_check_branch
        %283 = sbr.rel (%p281) target = $region48
      $region47: #{gnn_encoder_forward.1} parent=43 // pred_region
        %v284 = vld [vmem:[%s0] sm:$0xf]
        %v285 = vld [vmem:[%s0 + $0x4] sm:$0xf]
        %286 = vst [vmem:[%s6] sm:$0xf] %v284
        %287 = vst [vmem:[%s6 + $0x4] sm:$0xf] %v285
        %v288 = vld [vmem:[%s1] sm:$0xf]
        %v289 = vld [vmem:[%s1 + $0x4] sm:$0xf]
        %290 = vst [vmem:[%s7] sm:$0xf] %v288
        %291 = vst [vmem:[%s7 + $0x4] sm:$0xf] %v289
      $region48: #{gnn_encoder_forward.1} parent=43 // pred_fallthru
        _
      %v292 = vld [vmem:[%s6] sm:$0xf]
      %v293 = vld [vmem:[%s6 + $0x4] sm:$0xf]
      %v294 = vld [vmem:[%s7] sm:$0xf]
      %v295 = vld [vmem:[%s7 + $0x4] sm:$0xf]
      %v296 = vld [vmem:[%s2] sm:$0xf]
      %v297 = vld [vmem:[%s2 + $0x4] sm:$0xf]
      %v300 = vunpack.c.l.b16 %v296
      %v301 = vunpack.c.l.b16 %v297
      %v302 = vpack.c.b16 %v301, %v300
      %v305 = vunpack.c.l.b16 %v294
      %v306 = vunpack.c.l.b16 %v295
      %v307 = vpack.c.b16 %v306, %v305
      %vm309 = vcmask 130048
      %v311 = vsel %vm309, %v302, 0
      %313 = vmatpush.bf16.msra.mxu0 0
      %314 = vmatpush.bf16.msra.mxu0 0
      %315 = vmatpush.bf16.msra.mxu0 0
      %316 = vmatpush.bf16.msra.mxu0 0
      %317 = vmatpush.bf16.msra.mxu0 0
      %318 = vmatpush.bf16.msra.mxu0 0
      %319 = vmatpush.bf16.msra.mxu0 0
      %320 = vmatpush.bf16.msra.mxu0 %v307
      %321 = vmatmul.bf16.gmra.mxu0 %v311
      %v322 = vpop.f32.mrf.mxu0
      %v323 = vadd.f32 0.0, %v322
      %v324 = vpop.f32.mrf.mxu0
      %v325 = vadd.f32 0.0, %v324
      %326 = vdwg.mxu0
      %v327 = vpack.c.bf16 %v325, %v323
      %v328 = vld [vmem:[%s274] sm:$0xf]
      %v329 = vld [vmem:[%s274 + $0x4] sm:$0xf]
      %v330 = vld [vmem:[%s274 + $0x8] sm:$0xf]
      %v331 = vld [vmem:[%s274 + $0xc] sm:$0xf]
      %v332 = vld [vmem:[%s274 + $0x10] sm:$0xf]
      %v333 = vld [vmem:[%s274 + $0x14] sm:$0xf]
      %v334 = vld [vmem:[%s274 + $0x18] sm:$0xf]
      %v335 = vld [vmem:[%s274 + $0x1c] sm:$0xf]
      %v336 = vld [vmem:[%s274 + $0x20] sm:$0xf]
      %v337 = vld [vmem:[%s274 + $0x24] sm:$0xf]
      %v338 = vld [vmem:[%s274 + $0x28] sm:$0xf]
      %v339 = vld [vmem:[%s274 + $0x2c] sm:$0xf]
      %v340 = vld [vmem:[%s274 + $0x30] sm:$0xf]
      %v341 = vld [vmem:[%s274 + $0x34] sm:$0xf]
      %v342 = vld [vmem:[%s274 + $0x38] sm:$0xf]
      %v343 = vld [vmem:[%s274 + $0x3c] sm:$0xf]
      %s344 = scalar_lea.vmem %s274, 64
      %v345 = vld [vmem:[%s344] sm:$0xf]
      %v346 = vld [vmem:[%s344 + $0x4] sm:$0xf]
      %v347 = vld [vmem:[%s344 + $0x8] sm:$0xf]
      %v348 = vld [vmem:[%s344 + $0xc] sm:$0xf]
      %v349 = vld [vmem:[%s344 + $0x10] sm:$0xf]
      %v350 = vld [vmem:[%s344 + $0x14] sm:$0xf]
      %v351 = vld [vmem:[%s344 + $0x18] sm:$0xf]
      %v352 = vld [vmem:[%s344 + $0x1c] sm:$0xf]
      %v353 = vld [vmem:[%s344 + $0x20] sm:$0xf]
      %v354 = vld [vmem:[%s344 + $0x24] sm:$0xf]
      %v355 = vld [vmem:[%s344 + $0x28] sm:$0xf]
      %v356 = vld [vmem:[%s344 + $0x2c] sm:$0xf]
      %v357 = vld [vmem:[%s344 + $0x30] sm:$0xf]
      %v358 = vld [vmem:[%s344 + $0x34] sm:$0xf]
      %v359 = vld [vmem:[%s344 + $0x38] sm:$0xf]
      %v360 = vld [vmem:[%s344 + $0x3c] sm:$0xf]
      %v363 = vunpack.c.l.b16 %v292
      %v364 = vunpack.c.l.b16 %v293
      %v365 = vpack.c.b16 %v364, %v363
      %v383 = vunpack.c.l.b16 %v345
      %v384 = vunpack.c.l.b16 %v346
      %v385 = vunpack.c.l.b16 %v347
      %v386 = vunpack.c.l.b16 %v348
      %v387 = vunpack.c.l.b16 %v349
      %v388 = vunpack.c.l.b16 %v350
      %v389 = vunpack.c.l.b16 %v351
      %v390 = vunpack.c.l.b16 %v352
      %v391 = vunpack.c.l.b16 %v353
      %v392 = vunpack.c.l.b16 %v354
      %v393 = vunpack.c.l.b16 %v355
      %v394 = vunpack.c.l.b16 %v356
      %v395 = vunpack.c.l.b16 %v357
      %v396 = vunpack.c.l.b16 %v358
      %v397 = vunpack.c.l.b16 %v359
      %v398 = vunpack.c.l.b16 %v360
      %v399 = vpack.c.b16 %v384, %v383
      %v400 = vpack.c.b16 %v386, %v385
      %v401 = vpack.c.b16 %v388, %v387
      %v402 = vpack.c.b16 %v390, %v389
      %v403 = vpack.c.b16 %v392, %v391
      %v404 = vpack.c.b16 %v394, %v393
      %v405 = vpack.c.b16 %v396, %v395
      %v406 = vpack.c.b16 %v398, %v397
      %415 = vmatpush.bf16.msra.mxu0 %v406
      %416 = vmatpush.bf16.msra.mxu0 %v405
      %417 = vmatpush.bf16.msra.mxu0 %v404
      %418 = vmatpush.bf16.msra.mxu0 %v403
      %419 = vmatpush.bf16.msra.mxu0 %v402
      %420 = vmatpush.bf16.msra.mxu0 %v401
      %421 = vmatpush.bf16.msra.mxu0 %v400
      %422 = vmatpush.bf16.msra.mxu0 %v399
      %423 = vmatmul.bf16.gmra.mxu0 %v365
      %v424 = vpop.f32.mrf.mxu0
      %v425 = vadd.f32 0.0, %v424
      %v426 = vpop.f32.mrf.mxu0
      %v427 = vadd.f32 0.0, %v426
      %428 = vdwg.mxu0
      %v445 = vunpack.c.l.b16 %v328
      %v446 = vunpack.c.l.b16 %v329
      %v447 = vunpack.c.l.b16 %v330
      %v448 = vunpack.c.l.b16 %v331
      %v449 = vunpack.c.l.b16 %v332
      %v450 = vunpack.c.l.b16 %v333
      %v451 = vunpack.c.l.b16 %v334
      %v452 = vunpack.c.l.b16 %v335
      %v453 = vunpack.c.l.b16 %v336
      %v454 = vunpack.c.l.b16 %v337
      %v455 = vunpack.c.l.b16 %v338
      %v456 = vunpack.c.l.b16 %v339
      %v457 = vunpack.c.l.b16 %v340
      %v458 = vunpack.c.l.b16 %v341
      %v459 = vunpack.c.l.b16 %v342
      %v460 = vunpack.c.l.b16 %v343
      %v461 = vpack.c.b16 %v446, %v445
      %v462 = vpack.c.b16 %v448, %v447
      %v463 = vpack.c.b16 %v450, %v449
      %v464 = vpack.c.b16 %v452, %v451
      %v465 = vpack.c.b16 %v454, %v453
      %v466 = vpack.c.b16 %v456, %v455
      %v467 = vpack.c.b16 %v458, %v457
      %v468 = vpack.c.b16 %v460, %v459
      %477 = vmatpush.bf16.msra.mxu0 %v468
      %478 = vmatpush.bf16.msra.mxu0 %v467
      %479 = vmatpush.bf16.msra.mxu0 %v466
      %480 = vmatpush.bf16.msra.mxu0 %v465
      %481 = vmatpush.bf16.msra.mxu0 %v464
      %482 = vmatpush.bf16.msra.mxu0 %v463
      %483 = vmatpush.bf16.msra.mxu0 %v462
      %484 = vmatpush.bf16.msra.mxu0 %v461
      %485 = vmatmul.bf16.gmra.mxu0 %v327
      %v486 = vpop.f32.mrf.mxu0
      %v487 = vadd.f32 %v425, %v486
      %v488 = vpop.f32.mrf.mxu0
      %v489 = vadd.f32 %v427, %v488
      %490 = vdwg.mxu0
      %v491 = vld [vmem:[%s278] sm:$0x1]
      %v492 = vperm.slane %v491, 0
      %v493 = vadd.f32 %v487, %v492
      %v494 = vadd.f32 %v489, %v492
      %v495 = vmax.f32 %v493, 0.0
      %v496 = vmax.f32 %v494, 0.0
      %v497 = vpack.c.bf16 %v495, %v495
      %v498 = vpack.c.bf16 %v496, %v496
      %499 = vst [vmem:[%s6] sm:$0xf] %v497
      %500 = vst [vmem:[%s6 + $0x4] sm:$0xf] %v498
      %v501 = vld [vmem:[%s3] sm:$0xf]
      %v502 = vld [vmem:[%s3 + $0x4] sm:$0xf]
      %v505 = vunpack.c.l.b16 %v501
      %v506 = vunpack.c.l.b16 %v502
      %v507 = vpack.c.b16 %v506, %v505
      %v510 = vunpack.c.l.b16 %v497
      %v511 = vunpack.c.l.b16 %v498
      %v512 = vpack.c.b16 %v511, %v510
      %v515 = vsel %vm309, %v507, 0
      %517 = vmatpush.bf16.msra.mxu0 0
      %518 = vmatpush.bf16.msra.mxu0 0
      %519 = vmatpush.bf16.msra.mxu0 0
      %520 = vmatpush.bf16.msra.mxu0 0
      %521 = vmatpush.bf16.msra.mxu0 0
      %522 = vmatpush.bf16.msra.mxu0 0
      %523 = vmatpush.bf16.msra.mxu0 0
      %524 = vmatpush.bf16.msra.mxu0 %v512
      %525 = vmatmul.bf16.gmra.mxu0 %v515
      %v526 = vpop.f32.mrf.mxu0
      %v527 = vadd.f32 0.0, %v526
      %v528 = vpop.f32.mrf.mxu0
      %v529 = vadd.f32 0.0, %v528
      %530 = vdwg.mxu0
      %v531 = vpack.c.bf16 %v529, %v527
      %s532 = scalar_lea.vmem %s274, 128
      %v533 = vld [vmem:[%s532] sm:$0xf]
      %v534 = vld [vmem:[%s532 + $0x4] sm:$0xf]
      %v535 = vld [vmem:[%s532 + $0x8] sm:$0xf]
      %v536 = vld [vmem:[%s532 + $0xc] sm:$0xf]
      %v537 = vld [vmem:[%s532 + $0x10] sm:$0xf]
      %v538 = vld [vmem:[%s532 + $0x14] sm:$0xf]
      %v539 = vld [vmem:[%s532 + $0x18] sm:$0xf]
      %v540 = vld [vmem:[%s532 + $0x1c] sm:$0xf]
      %v541 = vld [vmem:[%s532 + $0x20] sm:$0xf]
      %v542 = vld [vmem:[%s532 + $0x24] sm:$0xf]
      %v543 = vld [vmem:[%s532 + $0x28] sm:$0xf]
      %v544 = vld [vmem:[%s532 + $0x2c] sm:$0xf]
      %v545 = vld [vmem:[%s532 + $0x30] sm:$0xf]
      %v546 = vld [vmem:[%s532 + $0x34] sm:$0xf]
      %v547 = vld [vmem:[%s532 + $0x38] sm:$0xf]
      %v548 = vld [vmem:[%s532 + $0x3c] sm:$0xf]
      %s549 = scalar_lea.vmem %s274, 192
      %v550 = vld [vmem:[%s549] sm:$0xf]
      %v551 = vld [vmem:[%s549 + $0x4] sm:$0xf]
      %v552 = vld [vmem:[%s549 + $0x8] sm:$0xf]
      %v553 = vld [vmem:[%s549 + $0xc] sm:$0xf]
      %v554 = vld [vmem:[%s549 + $0x10] sm:$0xf]
      %v555 = vld [vmem:[%s549 + $0x14] sm:$0xf]
      %v556 = vld [vmem:[%s549 + $0x18] sm:$0xf]
      %v557 = vld [vmem:[%s549 + $0x1c] sm:$0xf]
      %v558 = vld [vmem:[%s549 + $0x20] sm:$0xf]
      %v559 = vld [vmem:[%s549 + $0x24] sm:$0xf]
      %v560 = vld [vmem:[%s549 + $0x28] sm:$0xf]
      %v561 = vld [vmem:[%s549 + $0x2c] sm:$0xf]
      %v562 = vld [vmem:[%s549 + $0x30] sm:$0xf]
      %v563 = vld [vmem:[%s549 + $0x34] sm:$0xf]
      %v564 = vld [vmem:[%s549 + $0x38] sm:$0xf]
      %v565 = vld [vmem:[%s549 + $0x3c] sm:$0xf]
      %v582 = vunpack.c.l.b16 %v550
      %v583 = vunpack.c.l.b16 %v551
      %v584 = vunpack.c.l.b16 %v552
      %v585 = vunpack.c.l.b16 %v553
      %v586 = vunpack.c.l.b16 %v554
      %v587 = vunpack.c.l.b16 %v555
      %v588 = vunpack.c.l.b16 %v556
      %v589 = vunpack.c.l.b16 %v557
      %v590 = vunpack.c.l.b16 %v558
      %v591 = vunpack.c.l.b16 %v559
      %v592 = vunpack.c.l.b16 %v560
      %v593 = vunpack.c.l.b16 %v561
      %v594 = vunpack.c.l.b16 %v562
      %v595 = vunpack.c.l.b16 %v563
      %v596 = vunpack.c.l.b16 %v564
      %v597 = vunpack.c.l.b16 %v565
      %v598 = vpack.c.b16 %v583, %v582
      %v599 = vpack.c.b16 %v585, %v584
      %v600 = vpack.c.b16 %v587, %v586
      %v601 = vpack.c.b16 %v589, %v588
      %v602 = vpack.c.b16 %v591, %v590
      %v603 = vpack.c.b16 %v593, %v592
      %v604 = vpack.c.b16 %v595, %v594
      %v605 = vpack.c.b16 %v597, %v596
      %614 = vmatpush.bf16.msra.mxu0 %v605
      %615 = vmatpush.bf16.msra.mxu0 %v604
      %616 = vmatpush.bf16.msra.mxu0 %v603
      %617 = vmatpush.bf16.msra.mxu0 %v602
      %618 = vmatpush.bf16.msra.mxu0 %v601
      %619 = vmatpush.bf16.msra.mxu0 %v600
      %620 = vmatpush.bf16.msra.mxu0 %v599
      %621 = vmatpush.bf16.msra.mxu0 %v598
      %622 = vmatmul.bf16.gmra.mxu0 %v307
      %v623 = vpop.f32.mrf.mxu0
      %v624 = vadd.f32 0.0, %v623
      %v625 = vpop.f32.mrf.mxu0
      %v626 = vadd.f32 0.0, %v625
      %627 = vdwg.mxu0
      %v644 = vunpack.c.l.b16 %v533
      %v645 = vunpack.c.l.b16 %v534
      %v646 = vunpack.c.l.b16 %v535
      %v647 = vunpack.c.l.b16 %v536
      %v648 = vunpack.c.l.b16 %v537
      %v649 = vunpack.c.l.b16 %v538
      %v650 = vunpack.c.l.b16 %v539
      %v651 = vunpack.c.l.b16 %v540
      %v652 = vunpack.c.l.b16 %v541
      %v653 = vunpack.c.l.b16 %v542
      %v654 = vunpack.c.l.b16 %v543
      %v655 = vunpack.c.l.b16 %v544
      %v656 = vunpack.c.l.b16 %v545
      %v657 = vunpack.c.l.b16 %v546
      %v658 = vunpack.c.l.b16 %v547
      %v659 = vunpack.c.l.b16 %v548
      %v660 = vpack.c.b16 %v645, %v644
      %v661 = vpack.c.b16 %v647, %v646
      %v662 = vpack.c.b16 %v649, %v648
      %v663 = vpack.c.b16 %v651, %v650
      %v664 = vpack.c.b16 %v653, %v652
      %v665 = vpack.c.b16 %v655, %v654
      %v666 = vpack.c.b16 %v657, %v656
      %v667 = vpack.c.b16 %v659, %v658
      %676 = vmatpush.bf16.msra.mxu0 %v667
      %677 = vmatpush.bf16.msra.mxu0 %v666
      %678 = vmatpush.bf16.msra.mxu0 %v665
      %679 = vmatpush.bf16.msra.mxu0 %v664
      %680 = vmatpush.bf16.msra.mxu0 %v663
      %681 = vmatpush.bf16.msra.mxu0 %v662
      %682 = vmatpush.bf16.msra.mxu0 %v661
      %683 = vmatpush.bf16.msra.mxu0 %v660
      %684 = vmatmul.bf16.gmra.mxu0 %v531
      %v685 = vpop.f32.mrf.mxu0
      %v686 = vadd.f32 %v624, %v685
      %v687 = vpop.f32.mrf.mxu0
      %v688 = vadd.f32 %v626, %v687
      %689 = vdwg.mxu0
      %v690 = vld [vmem:[%s278 + $0x1] sm:$0x1]
      %v691 = vperm.slane %v690, 0
      %v692 = vadd.f32 %v686, %v691
      %v693 = vadd.f32 %v688, %v691
      %v694 = vmax.f32 %v692, 0.0
      %v695 = vmax.f32 %v693, 0.0
      %v696 = vpack.c.bf16 %v694, %v694
      %v697 = vpack.c.bf16 %v695, %v695
      %698 = vst [vmem:[%s7] sm:$0xf] %v696
      %699 = vst [vmem:[%s7 + $0x4] sm:$0xf] %v697
      // Predicated region
      $region49: #{gnn_encoder_forward.1} parent=43 // pred_check
        %p700 = pneg %p168
      $region50: #{gnn_encoder_forward.1} parent=43 // pred_check_branch
        %702 = sbr.rel (%p700) target = $region52
      $region51: #{gnn_encoder_forward.1} parent=43 // pred_region
        _
      $region52: #{gnn_encoder_forward.1} parent=43 // pred_fallthru
        _
      // Predicated region
      $region53: #{gnn_encoder_forward.1} parent=43 // pred_check
        %p703 = pneg %p189
      $region54: #{gnn_encoder_forward.1} parent=43 // pred_check_branch
        %705 = sbr.rel (%p703) target = $region56
      $region55: #{gnn_encoder_forward.1} parent=43 // pred_region
        _
      $region56: #{gnn_encoder_forward.1} parent=43 // pred_fallthru
        _
      // Predicated region
      $region57: #{gnn_encoder_forward.1} parent=43 // pred_check
        %p706 = pneg %p168
      $region58: #{gnn_encoder_forward.1} parent=43 // pred_check_branch
        %708 = sbr.rel (%p706) target = $region60
      $region59: #{gnn_encoder_forward.1} parent=43 // pred_region
        _
      $region60: #{gnn_encoder_forward.1} parent=43 // pred_fallthru
        _
      // Predicated region
      $region61: #{gnn_encoder_forward.1} parent=43 // pred_check
        %p709 = pneg %p189
      $region62: #{gnn_encoder_forward.1} parent=43 // pred_check_branch
        %711 = sbr.rel (%p709) target = $region64
      $region63: #{gnn_encoder_forward.1} parent=43 // pred_region
        _
      $region64: #{gnn_encoder_forward.1} parent=43 // pred_fallthru
        _
    $region44: #{gnn_encoder_forward.1} parent=5 // pred_fallthru
      _
    %p712 = scmp.le.s32.totalorder 2, %s14
    // Predicated region
    $region65: #{gnn_encoder_forward.1} parent=5 // pred_check
      %p713 = pneg %p712
    $region66: #{gnn_encoder_forward.1} parent=5 // pred_check_branch
      %715 = sbr.rel (%p713) target = $region68
    $region67: #{gnn_encoder_forward.1} parent=5 // pred_region
      %s716 = ssub.s32 %s14, 2
    $region68: #{gnn_encoder_forward.1} parent=5 // pred_fallthru
      _
  $region6: #{gnn_encoder_forward.1} parent=0 // loop_footer
    %s18 = sadd.s32 1, %s14
  $region7: #{gnn_encoder_forward.1} parent=0 // loop_footer_branch
    %13 = sbr.rel target = $region3
  $region8: #{gnn_encoder_forward.1} parent=0 // loop_exit
    _

// kernel: gnn_encoder_forward.1
$region0: #{gnn_encoder_forward.1}
  #allocation0 [shape = 'u32[]', space=smem, size = 0x4, offset = 0x4, fixed_abs, tag = 'smem constant byte address 0x4 - core index']
  #allocation1 [shape = 'u32[72,128]{1,0:T(1,128)}', space=vmem, size = 0x9000, scoped, tag = 'internal scratch']
  %s0 = inlined_call_operand.vmem [shape: bf16[16,128], index: 0, kind: input, shape index: {}, may-alias: {0,6}]
  %s1 = inlined_call_operand.vmem [shape: bf16[16,128], index: 1, kind: input, shape index: {}, may-alias: {1,7}]
  %s2 = inlined_call_operand.vmem [shape: bf16[16,16], index: 2, kind: input, shape index: {}]
  %s3 = inlined_call_operand.vmem [shape: bf16[16,16], index: 3, kind: input, shape index: {}]
  %s4 = inlined_call_operand.vmem [shape: bf16[2,4,128,128], index: 4, kind: input, shape index: {}]
  %s5 = inlined_call_operand.vmem [shape: f32[2,2,128], index: 5, kind: input, shape index: {}]
  %s6 = inlined_call_operand.vmem [shape: bf16[16,128], index: 6, kind: output, shape index: {0}, may-alias: {0,6}]
  %s7 = inlined_call_operand.vmem [shape: bf16[16,128], index: 7, kind: output, shape index: {1}, may-alias: {1,7}]
  %8 = xla_tuple %s6, %s7
  %s9 = sld [smem:[#allocation0]]
  $region69: #{gnn_encoder_forward.1} parent=0
    _
  %s11 = ssub.s32 1, %s9
  %s12 = scalar_select 0, %s11, %s9
  loop: start=0, step=1, limit=4
  $region2: #{gnn_encoder_forward.1} parent=0 // loop_pre_header
    _
  $region3: #{gnn_encoder_forward.1} parent=0 // loop_header
    %s14 = sphi 0, %s18
    %p15 = scmp.ge.s32.totalorder %s14, 4
    %s22 = sphi 0, %s22
    %s24 = sphi 0, %s22
    %s25 = sphi 0, %s24
    %s39 = sphi 0, %s25
    %s43 = sphi 0, %s43
    %s45 = sphi 0, %s43
    %s46 = sphi 0, %s45
    %s60 = sphi 0, %s46
    %s64 = sphi 0, %s64
    %s66 = sphi 0, %s64
    %s67 = sphi 0, %s66
    %s81 = sphi 0, %s67
    %s85 = sphi 0, %s85
    %s87 = sphi 0, %s85
    %s88 = sphi 0, %s87
    %s102 = sphi 0, %s88
    %s108 = sphi 0, %s110
    %s111 = sphi 0, %s108
    %s112 = sphi 0, %s111
    %s128 = sphi 0, %s112
    %s134 = sphi 0, %s136
    %s137 = sphi 0, %s134
    %s138 = sphi 0, %s137
    %s154 = sphi 0, %s138
    %s158 = sphi 0, %s158
    %s160 = sphi 0, %s158
    %s161 = sphi 0, %s160
    %s175 = sphi 0, %s161
    %s179 = sphi 0, %s179
    %s181 = sphi 0, %s179
    %s182 = sphi 0, %s181
    %s196 = sphi 0, %s182
  $region4: #{gnn_encoder_forward.1} parent=0 // loop_header_branch
    %17 = sbr.rel (%p15) target = $region8
  $region5: #{gnn_encoder_forward.1} parent=0 // loop_body
    %s19 = ssub.s32 %s14, 1
    %s20 = ssub.s32 %s14, 2
    %s21 = sadd.s32 %s14, 1
    %s23 = sadd.s32 %s22, 1
    %p26 = scmp.eq.s32.totalorder %s14, 1
    %p27 = scmp.ne.s32.totalorder %s22, %s24
    %p28 = scmp.eq.s32.totalorder %s14, 0
    %p29 = por %p27, %p28
    %p30 = scmp.ne.s32.totalorder %s22, %s24
    %p31 = scmp.eq.s32.totalorder %s19, 1
    %p32 = por %p30, %p31
    %p33 = scmp.ne.s32.totalorder %s24, %s25
    %p34 = scmp.eq.s32.totalorder %s19, 0
    %p35 = por %p33, %p34
    %p36 = scmp.ne.s32.totalorder %s24, %s25
    %p37 = scmp.eq.s32.totalorder %s20, 1
    %p38 = por %p36, %p37
    %p40 = scmp.ne.s32.totalorder %s25, %s39
    %p41 = scmp.eq.s32.totalorder %s20, 0
    %p42 = por %p40, %p41
    %s44 = sadd.s32 %s43, 1
    %p47 = scmp.eq.s32.totalorder %s14, 1
    %p48 = scmp.ne.s32.totalorder %s43, %s45
    %p49 = scmp.eq.s32.totalorder %s14, 0
    %p50 = por %p48, %p49
    %p51 = scmp.ne.s32.totalorder %s43, %s45
    %p52 = scmp.eq.s32.totalorder %s19, 1
    %p53 = por %p51, %p52
    %p54 = scmp.ne.s32.totalorder %s45, %s46
    %p55 = scmp.eq.s32.totalorder %s19, 0
    %p56 = por %p54, %p55
    %p57 = scmp.ne.s32.totalorder %s45, %s46
    %p58 = scmp.eq.s32.totalorder %s20, 1
    %p59 = por %p57, %p58
    %p61 = scmp.ne.s32.totalorder %s46, %s60
    %p62 = scmp.eq.s32.totalorder %s20, 0
    %p63 = por %p61, %p62
    %s65 = sadd.s32 %s64, 1
    %p68 = scmp.eq.s32.totalorder %s14, 1
    %p69 = scmp.ne.s32.totalorder %s64, %s66
    %p70 = scmp.eq.s32.totalorder %s14, 0
    %p71 = por %p69, %p70
    %p72 = scmp.ne.s32.totalorder %s64, %s66
    %p73 = scmp.eq.s32.totalorder %s19, 1
    %p74 = por %p72, %p73
    %p75 = scmp.ne.s32.totalorder %s66, %s67
    %p76 = scmp.eq.s32.totalorder %s19, 0
    %p77 = por %p75, %p76
    %p78 = scmp.ne.s32.totalorder %s66, %s67
    %p79 = scmp.eq.s32.totalorder %s20, 1
    %p80 = por %p78, %p79
    %p82 = scmp.ne.s32.totalorder %s67, %s81
    %p83 = scmp.eq.s32.totalorder %s20, 0
    %p84 = por %p82, %p83
    %s86 = sadd.s32 %s85, 1
    %p89 = scmp.eq.s32.totalorder %s14, 1
    %p90 = scmp.ne.s32.totalorder %s85, %s87
    %p91 = scmp.eq.s32.totalorder %s14, 0
    %p92 = por %p90, %p91
    %p93 = scmp.ne.s32.totalorder %s85, %s87
    %p94 = scmp.eq.s32.totalorder %s19, 1
    %p95 = por %p93, %p94
    %p96 = scmp.ne.s32.totalorder %s87, %s88
    %p97 = scmp.eq.s32.totalorder %s19, 0
    %p98 = por %p96, %p97
    %p99 = scmp.ne.s32.totalorder %s87, %s88
    %p100 = scmp.eq.s32.totalorder %s20, 1
    %p101 = por %p99, %p100
    %p103 = scmp.ne.s32.totalorder %s88, %s102
    %p104 = scmp.eq.s32.totalorder %s20, 0
    %p105 = por %p103, %p104
    %s106 = ssub.s32 %s14, %s21
    %p107 = scmp.eq.s32.totalorder %s106, 0
    %s109 = sadd.s32 %s108, 1
    %s110 = scalar_select %p107, %s108, %s109
    %p113 = pneg %p107
    %p114 = scmp.eq.s32.totalorder %s14, 1
    %p115 = por %p113, %p114
    %p116 = scmp.ne.s32.totalorder %s108, %s111
    %p117 = scmp.eq.s32.totalorder %s14, 0
    %p118 = por %p116, %p117
    %p119 = scmp.ne.s32.totalorder %s108, %s111
    %p120 = scmp.eq.s32.totalorder %s19, 1
    %p121 = por %p119, %p120
    %p122 = scmp.ne.s32.totalorder %s111, %s112
    %p123 = scmp.eq.s32.totalorder %s19, 0
    %p124 = por %p122, %p123
    %p125 = scmp.ne.s32.totalorder %s111, %s112
    %p126 = scmp.eq.s32.totalorder %s20, 1
    %p127 = por %p125, %p126
    %p129 = scmp.ne.s32.totalorder %s112, %s128
    %p130 = scmp.eq.s32.totalorder %s20, 0
    %p131 = por %p129, %p130
    %s132 = ssub.s32 %s14, %s21
    %p133 = scmp.eq.s32.totalorder %s132, 0
    %s135 = sadd.s32 %s134, 1
    %s136 = scalar_select %p133, %s134, %s135
    %p139 = pneg %p133
    %p140 = scmp.eq.s32.totalorder %s14, 1
    %p141 = por %p139, %p140
    %p142 = scmp.ne.s32.totalorder %s134, %s137
    %p143 = scmp.eq.s32.totalorder %s14, 0
    %p144 = por %p142, %p143
    %p145 = scmp.ne.s32.totalorder %s134, %s137
    %p146 = scmp.eq.s32.totalorder %s19, 1
    %p147 = por %p145, %p146
    %p148 = scmp.ne.s32.totalorder %s137, %s138
    %p149 = scmp.eq.s32.totalorder %s19, 0
    %p150 = por %p148, %p149
    %p151 = scmp.ne.s32.totalorder %s137, %s138
    %p152 = scmp.eq.s32.totalorder %s20, 1
    %p153 = por %p151, %p152
    %p155 = scmp.ne.s32.totalorder %s138, %s154
    %p156 = scmp.eq.s32.totalorder %s20, 0
    %p157 = por %p155, %p156
    %s159 = sadd.s32 %s158, 1
    %p162 = scmp.eq.s32.totalorder %s14, 1
    %p163 = scmp.ne.s32.totalorder %s158, %s160
    %p164 = scmp.eq.s32.totalorder %s14, 0
    %p165 = por %p163, %p164
    %p166 = scmp.ne.s32.totalorder %s158, %s160
    %p167 = scmp.eq.s32.totalorder %s19, 1
    %p168 = por %p166, %p167
    %p169 = scmp.ne.s32.totalorder %s160, %s161
    %p170 = scmp.eq.s32.totalorder %s19, 0
    %p171 = por %p169, %p170
    %p172 = scmp.ne.s32.totalorder %s160, %s161
    %p173 = scmp.eq.s32.totalorder %s20, 1
    %p174 = por %p172, %p173
    %p176 = scmp.ne.s32.totalorder %s161, %s175
    %p177 = scmp.eq.s32.totalorder %s20, 0
    %p178 = por %p176, %p177
    %s180 = sadd.s32 %s179, 1
    %p183 = scmp.eq.s32.totalorder %s14, 1
    %p184 = scmp.ne.s32.totalorder %s179, %s181
    %p185 = scmp.eq.s32.totalorder %s14, 0
    %p186 = por %p184, %p185
    %p187 = scmp.ne.s32.totalorder %s179, %s181
    %p188 = scmp.eq.s32.totalorder %s19, 1
    %p189 = por %p187, %p188
    %p190 = scmp.ne.s32.totalorder %s181, %s182
    %p191 = scmp.eq.s32.totalorder %s19, 0
    %p192 = por %p190, %p191
    %p193 = scmp.ne.s32.totalorder %s181, %s182
    %p194 = scmp.eq.s32.totalorder %s20, 1
    %p195 = por %p193, %p194
    %p197 = scmp.ne.s32.totalorder %s182, %s196
    %p198 = scmp.eq.s32.totalorder %s20, 0
    %p199 = por %p197, %p198
    %p200 = scmp.le.s32.totalorder 1, %s14
    %p201 = scmp.lt.s32.totalorder %s14, 3
    %p202 = pnand %p200, %p201
    %p203 = pneg %p202
    // Predicated region
    $region9: #{gnn_encoder_forward.1} parent=5 // pred_check
      _
    $region10: #{gnn_encoder_forward.1} parent=5 // pred_check_branch
      %205 = sbr.rel (%p202) target = $region12
    $region11: #{gnn_encoder_forward.1} parent=5 // pred_region
      %s206 = ssub.s32 %s14, 1
      // Predicated region
      $region13: #{gnn_encoder_forward.1} parent=11 // pred_check
        %p207 = pneg %p35
      $region14: #{gnn_encoder_forward.1} parent=11 // pred_check_branch
        %209 = sbr.rel (%p207) target = $region16
      $region15: #{gnn_encoder_forward.1} parent=11 // pred_region
        _
      $region16: #{gnn_encoder_forward.1} parent=11 // pred_fallthru
        _
      // Predicated region
      $region17: #{gnn_encoder_forward.1} parent=11 // pred_check
        %p210 = pneg %p56
      $region18: #{gnn_encoder_forward.1} parent=11 // pred_check_branch
        %212 = sbr.rel (%p210) target = $region20
      $region19: #{gnn_encoder_forward.1} parent=11 // pred_region
        _
      $region20: #{gnn_encoder_forward.1} parent=11 // pred_fallthru
        _
      // Predicated region
      $region21: #{gnn_encoder_forward.1} parent=11 // pred_check
        %p213 = pneg %p77
      $region22: #{gnn_encoder_forward.1} parent=11 // pred_check_branch
        %215 = sbr.rel (%p213) target = $region24
      $region23: #{gnn_encoder_forward.1} parent=11 // pred_region
        _
      $region24: #{gnn_encoder_forward.1} parent=11 // pred_fallthru
        _
      // Predicated region
      $region25: #{gnn_encoder_forward.1} parent=11 // pred_check
        %p216 = pneg %p98
      $region26: #{gnn_encoder_forward.1} parent=11 // pred_check_branch
        %218 = sbr.rel (%p216) target = $region28
      $region27: #{gnn_encoder_forward.1} parent=11 // pred_region
        _
      $region28: #{gnn_encoder_forward.1} parent=11 // pred_fallthru
        _
    $region12: #{gnn_encoder_forward.1} parent=5 // pred_fallthru
      _
    %p219 = scmp.lt.s32.totalorder %s14, 2
    // Predicated region
    $region29: #{gnn_encoder_forward.1} parent=5 // pred_check
      %p220 = pneg %p219
    $region30: #{gnn_encoder_forward.1} parent=5 // pred_check_branch
      %222 = sbr.rel (%p220) target = $region32
    $region31: #{gnn_encoder_forward.1} parent=5 // pred_region
      // Predicated region
      $region33: #{gnn_encoder_forward.1} parent=31 // pred_check
        %p223 = pneg %p118
      $region34: #{gnn_encoder_forward.1} parent=31 // pred_check_branch
        %225 = sbr.rel (%p223) target = $region36
      $region35: #{gnn_encoder_forward.1} parent=31 // pred_region
        %p226 = scmp.lt.s32.totalorder %s14, 1
        %s227 = scalar_select %p226, %s14, 1
        %s228 = smul.addr %s227, 64
        %s229 = smul.addr %s228, 4
        %s230 = scalar_lea.vmem %s4, %s229
      $region36: #{gnn_encoder_forward.1} parent=31 // pred_fallthru
        _
      // Predicated region
      $region37: #{gnn_encoder_forward.1} parent=31 // pred_check
        %p231 = pneg %p144
      $region38: #{gnn_encoder_forward.1} parent=31 // pred_check_branch
        %233 = sbr.rel (%p231) target = $region40
      $region39: #{gnn_encoder_forward.1} parent=31 // pred_region
        %p234 = scmp.lt.s32.totalorder %s14, 1
        %s235 = scalar_select %p234, %s14, 1
        %s236 = smul.addr %s235, 2
        %s237 = scalar_lea.vmem %s5, %s236
      $region40: #{gnn_encoder_forward.1} parent=31 // pred_fallthru
        _
    $region32: #{gnn_encoder_forward.1} parent=5 // pred_fallthru
      _
    %p238 = scmp.le.s32.totalorder 1, %s14
    %p239 = scmp.lt.s32.totalorder %s14, 3
    %p240 = pnand %p238, %p239
    %p241 = pneg %p240
    // Predicated region
    $region41: #{gnn_encoder_forward.1} parent=5 // pred_check
      _
    $region42: #{gnn_encoder_forward.1} parent=5 // pred_check_branch
      %243 = sbr.rel (%p240) target = $region44
    $region43: #{gnn_encoder_forward.1} parent=5 // pred_region
      %s244 = ssub.s32 %s14, 1
      %p245 = pneg %p35
      %p246 = pneg %p32
      %p247 = pneg %p56
      %p248 = pneg %p53
      %p249 = pneg %p77
      %p250 = pneg %p74
      %p251 = pneg %p98
      %p252 = pneg %p95
      %p253 = scmp.lt.s32.totalorder %s19, 1
      %s254 = scalar_select %p253, %s19, 1
      %s255 = smul.addr %s254, 64
      %s256 = smul.addr %s255, 4
      %s257 = scalar_lea.vmem %s4, %s256
      %p258 = pneg %p124
      %p259 = pneg %p121
      %p260 = scmp.lt.s32.totalorder %s19, 1
      %s261 = scalar_select %p260, %s19, 1
      %s262 = smul.addr %s261, 2
      %s263 = scalar_lea.vmem %s5, %s262
      %p264 = pneg %p150
      %p265 = pneg %p147
      %p266 = pneg %p171
      %p267 = pneg %p168
      %p268 = pneg %p192
      %p269 = pneg %p189
      %p270 = scmp.lt.s32.totalorder %s19, 1
      %s271 = scalar_select %p270, %s19, 1
      %s272 = smul.addr %s271, 64
      %s273 = smul.addr %s272, 4
      %s274 = scalar_lea.vmem %s4, %s273
      %p275 = scmp.lt.s32.totalorder %s19, 1
      %s276 = scalar_select %p275, %s19, 1
      %s277 = smul.addr %s276, 2
      %s278 = scalar_lea.vmem %s5, %s277
      %p280 = scmp.eq.s32.totalorder %s19, 0
      // Predicated region
      $region45: #{gnn_encoder_forward.1} parent=43 // pred_check
        %p281 = pneg %p280
      $region46: #{gnn_encoder_forward.1} parent=43 // pred_check_branch
        %283 = sbr.rel (%p281) target = $region48
      $region47: #{gnn_encoder_forward.1} parent=43 // pred_region
        %v284 = vld [vmem:[%s0] sm:$0xf]
        %v285 = vld [vmem:[%s0 + $0x4] sm:$0xf]
        %286 = vst [vmem:[%s6] sm:$0xf] %v284
        %287 = vst [vmem:[%s6 + $0x4] sm:$0xf] %v285
        %v288 = vld [vmem:[%s1] sm:$0xf]
        %v289 = vld [vmem:[%s1 + $0x4] sm:$0xf]
        %290 = vst [vmem:[%s7] sm:$0xf] %v288
        %291 = vst [vmem:[%s7 + $0x4] sm:$0xf] %v289
      $region48: #{gnn_encoder_forward.1} parent=43 // pred_fallthru
        _
      %v292 = vld [vmem:[%s6] sm:$0xf]
      %v293 = vld [vmem:[%s6 + $0x4] sm:$0xf]
      %v294 = vld [vmem:[%s7] sm:$0xf]
      %v295 = vld [vmem:[%s7 + $0x4] sm:$0xf]
      %v296 = vld [vmem:[%s2] sm:$0xf]
      %v297 = vld [vmem:[%s2 + $0x4] sm:$0xf]
      %v300 = vunpack.c.l.b16 %v296
      %v301 = vunpack.c.l.b16 %v297
      %v302 = vpack.c.b16 %v301, %v300
      %v305 = vunpack.c.l.b16 %v294
      %v306 = vunpack.c.l.b16 %v295
      %v307 = vpack.c.b16 %v306, %v305
      %vm309 = vcmask 130048
      %v311 = vsel %vm309, %v302, 0
      %313 = vmatpush.bf16.msra.mxu0 0
      %314 = vmatpush.bf16.msra.mxu0 0
      %315 = vmatpush.bf16.msra.mxu0 0
      %316 = vmatpush.bf16.msra.mxu0 0
      %317 = vmatpush.bf16.msra.mxu0 0
      %318 = vmatpush.bf16.msra.mxu0 0
      %319 = vmatpush.bf16.msra.mxu0 0
      %320 = vmatpush.bf16.msra.mxu0 %v307
      %321 = vmatmul.bf16.gmra.mxu0 %v311
      %v322 = vpop.f32.mrf.mxu0
      %v323 = vadd.f32 0.0, %v322
      %v324 = vpop.f32.mrf.mxu0
      %v325 = vadd.f32 0.0, %v324
      %326 = vdwg.mxu0
      %v327 = vpack.c.bf16 %v325, %v323
      %v328 = vld [vmem:[%s274] sm:$0xf]
      %v329 = vld [vmem:[%s274 + $0x4] sm:$0xf]
      %v330 = vld [vmem:[%s274 + $0x8] sm:$0xf]
      %v331 = vld [vmem:[%s274 + $0xc] sm:$0xf]
      %v332 = vld [vmem:[%s274 + $0x10] sm:$0xf]
      %v333 = vld [vmem:[%s274 + $0x14] sm:$0xf]
      %v334 = vld [vmem:[%s274 + $0x18] sm:$0xf]
      %v335 = vld [vmem:[%s274 + $0x1c] sm:$0xf]
      %v336 = vld [vmem:[%s274 + $0x20] sm:$0xf]
      %v337 = vld [vmem:[%s274 + $0x24] sm:$0xf]
      %v338 = vld [vmem:[%s274 + $0x28] sm:$0xf]
      %v339 = vld [vmem:[%s274 + $0x2c] sm:$0xf]
      %v340 = vld [vmem:[%s274 + $0x30] sm:$0xf]
      %v341 = vld [vmem:[%s274 + $0x34] sm:$0xf]
      %v342 = vld [vmem:[%s274 + $0x38] sm:$0xf]
      %v343 = vld [vmem:[%s274 + $0x3c] sm:$0xf]
      %s344 = scalar_lea.vmem %s274, 64
      %v345 = vld [vmem:[%s344] sm:$0xf]
      %v346 = vld [vmem:[%s344 + $0x4] sm:$0xf]
      %v347 = vld [vmem:[%s344 + $0x8] sm:$0xf]
      %v348 = vld [vmem:[%s344 + $0xc] sm:$0xf]
      %v349 = vld [vmem:[%s344 + $0x10] sm:$0xf]
      %v350 = vld [vmem:[%s344 + $0x14] sm:$0xf]
      %v351 = vld [vmem:[%s344 + $0x18] sm:$0xf]
      %v352 = vld [vmem:[%s344 + $0x1c] sm:$0xf]
      %v353 = vld [vmem:[%s344 + $0x20] sm:$0xf]
      %v354 = vld [vmem:[%s344 + $0x24] sm:$0xf]
      %v355 = vld [vmem:[%s344 + $0x28] sm:$0xf]
      %v356 = vld [vmem:[%s344 + $0x2c] sm:$0xf]
      %v357 = vld [vmem:[%s344 + $0x30] sm:$0xf]
      %v358 = vld [vmem:[%s344 + $0x34] sm:$0xf]
      %v359 = vld [vmem:[%s344 + $0x38] sm:$0xf]
      %v360 = vld [vmem:[%s344 + $0x3c] sm:$0xf]
      %v363 = vunpack.c.l.b16 %v292
      %v364 = vunpack.c.l.b16 %v293
      %v365 = vpack.c.b16 %v364, %v363
      %v383 = vunpack.c.l.b16 %v345
      %v384 = vunpack.c.l.b16 %v346
      %v385 = vunpack.c.l.b16 %v347
      %v386 = vunpack.c.l.b16 %v348
      %v387 = vunpack.c.l.b16 %v349
      %v388 = vunpack.c.l.b16 %v350
      %v389 = vunpack.c.l.b16 %v351
      %v390 = vunpack.c.l.b16 %v352
      %v391 = vunpack.c.l.b16 %v353
      %v392 = vunpack.c.l.b16 %v354
      %v393 = vunpack.c.l.b16 %v355
      %v394 = vunpack.c.l.b16 %v356
      %v395 = vunpack.c.l.b16 %v357
      %v396 = vunpack.c.l.b16 %v358
      %v397 = vunpack.c.l.b16 %v359
      %v398 = vunpack.c.l.b16 %v360
      %v399 = vpack.c.b16 %v384, %v383
      %v400 = vpack.c.b16 %v386, %v385
      %v401 = vpack.c.b16 %v388, %v387
      %v402 = vpack.c.b16 %v390, %v389
      %v403 = vpack.c.b16 %v392, %v391
      %v404 = vpack.c.b16 %v394, %v393
      %v405 = vpack.c.b16 %v396, %v395
      %v406 = vpack.c.b16 %v398, %v397
      %415 = vmatpush.bf16.msra.mxu0 %v406
      %416 = vmatpush.bf16.msra.mxu0 %v405
      %417 = vmatpush.bf16.msra.mxu0 %v404
      %418 = vmatpush.bf16.msra.mxu0 %v403
      %419 = vmatpush.bf16.msra.mxu0 %v402
      %420 = vmatpush.bf16.msra.mxu0 %v401
      %421 = vmatpush.bf16.msra.mxu0 %v400
      %422 = vmatpush.bf16.msra.mxu0 %v399
      %423 = vmatmul.bf16.gmra.mxu0 %v365
      %v424 = vpop.f32.mrf.mxu0
      %v425 = vadd.f32 0.0, %v424
      %v426 = vpop.f32.mrf.mxu0
      %v427 = vadd.f32 0.0, %v426
      %428 = vdwg.mxu0
      %v445 = vunpack.c.l.b16 %v328
      %v446 = vunpack.c.l.b16 %v329
      %v447 = vunpack.c.l.b16 %v330
      %v448 = vunpack.c.l.b16 %v331
      %v449 = vunpack.c.l.b16 %v332
      %v450 = vunpack.c.l.b16 %v333
      %v451 = vunpack.c.l.b16 %v334
      %v452 = vunpack.c.l.b16 %v335
      %v453 = vunpack.c.l.b16 %v336
      %v454 = vunpack.c.l.b16 %v337
      %v455 = vunpack.c.l.b16 %v338
      %v456 = vunpack.c.l.b16 %v339
      %v457 = vunpack.c.l.b16 %v340
      %v458 = vunpack.c.l.b16 %v341
      %v459 = vunpack.c.l.b16 %v342
      %v460 = vunpack.c.l.b16 %v343
      %v461 = vpack.c.b16 %v446, %v445
      %v462 = vpack.c.b16 %v448, %v447
      %v463 = vpack.c.b16 %v450, %v449
      %v464 = vpack.c.b16 %v452, %v451
      %v465 = vpack.c.b16 %v454, %v453
      %v466 = vpack.c.b16 %v456, %v455
      %v467 = vpack.c.b16 %v458, %v457
      %v468 = vpack.c.b16 %v460, %v459
      %477 = vmatpush.bf16.msra.mxu0 %v468
      %478 = vmatpush.bf16.msra.mxu0 %v467
      %479 = vmatpush.bf16.msra.mxu0 %v466
      %480 = vmatpush.bf16.msra.mxu0 %v465
      %481 = vmatpush.bf16.msra.mxu0 %v464
      %482 = vmatpush.bf16.msra.mxu0 %v463
      %483 = vmatpush.bf16.msra.mxu0 %v462
      %484 = vmatpush.bf16.msra.mxu0 %v461
      %485 = vmatmul.bf16.gmra.mxu0 %v327
      %v486 = vpop.f32.mrf.mxu0
      %v487 = vadd.f32 %v425, %v486
      %v488 = vpop.f32.mrf.mxu0
      %v489 = vadd.f32 %v427, %v488
      %490 = vdwg.mxu0
      %v491 = vld [vmem:[%s278] sm:$0x1]
      %v492 = vperm.slane %v491, 0
      %v493 = vadd.f32 %v487, %v492
      %v494 = vadd.f32 %v489, %v492
      %v495 = vmax.f32 %v493, 0.0
      %v496 = vmax.f32 %v494, 0.0
      %v497 = vpack.c.bf16 %v495, %v495
      %v498 = vpack.c.bf16 %v496, %v496
      %499 = vst [vmem:[%s6] sm:$0xf] %v497
      %500 = vst [vmem:[%s6 + $0x4] sm:$0xf] %v498
      %v501 = vld [vmem:[%s3] sm:$0xf]
      %v502 = vld [vmem:[%s3 + $0x4] sm:$0xf]
      %v505 = vunpack.c.l.b16 %v501
      %v506 = vunpack.c.l.b16 %v502
      %v507 = vpack.c.b16 %v506, %v505
      %v510 = vunpack.c.l.b16 %v497
      %v511 = vunpack.c.l.b16 %v498
      %v512 = vpack.c.b16 %v511, %v510
      %v515 = vsel %vm309, %v507, 0
      %517 = vmatpush.bf16.msra.mxu0 0
      %518 = vmatpush.bf16.msra.mxu0 0
      %519 = vmatpush.bf16.msra.mxu0 0
      %520 = vmatpush.bf16.msra.mxu0 0
      %521 = vmatpush.bf16.msra.mxu0 0
      %522 = vmatpush.bf16.msra.mxu0 0
      %523 = vmatpush.bf16.msra.mxu0 0
      %524 = vmatpush.bf16.msra.mxu0 %v512
      %525 = vmatmul.bf16.gmra.mxu0 %v515
      %v526 = vpop.f32.mrf.mxu0
      %v527 = vadd.f32 0.0, %v526
      %v528 = vpop.f32.mrf.mxu0
      %v529 = vadd.f32 0.0, %v528
      %530 = vdwg.mxu0
      %v531 = vpack.c.bf16 %v529, %v527
      %s532 = scalar_lea.vmem %s274, 128
      %v533 = vld [vmem:[%s532] sm:$0xf]
      %v534 = vld [vmem:[%s532 + $0x4] sm:$0xf]
      %v535 = vld [vmem:[%s532 + $0x8] sm:$0xf]
      %v536 = vld [vmem:[%s532 + $0xc] sm:$0xf]
      %v537 = vld [vmem:[%s532 + $0x10] sm:$0xf]
      %v538 = vld [vmem:[%s532 + $0x14] sm:$0xf]
      %v539 = vld [vmem:[%s532 + $0x18] sm:$0xf]
      %v540 = vld [vmem:[%s532 + $0x1c] sm:$0xf]
      %v541 = vld [vmem:[%s532 + $0x20] sm:$0xf]
      %v542 = vld [vmem:[%s532 + $0x24] sm:$0xf]
      %v543 = vld [vmem:[%s532 + $0x28] sm:$0xf]
      %v544 = vld [vmem:[%s532 + $0x2c] sm:$0xf]
      %v545 = vld [vmem:[%s532 + $0x30] sm:$0xf]
      %v546 = vld [vmem:[%s532 + $0x34] sm:$0xf]
      %v547 = vld [vmem:[%s532 + $0x38] sm:$0xf]
      %v548 = vld [vmem:[%s532 + $0x3c] sm:$0xf]
      %s549 = scalar_lea.vmem %s274, 192
      %v550 = vld [vmem:[%s549] sm:$0xf]
      %v551 = vld [vmem:[%s549 + $0x4] sm:$0xf]
      %v552 = vld [vmem:[%s549 + $0x8] sm:$0xf]
      %v553 = vld [vmem:[%s549 + $0xc] sm:$0xf]
      %v554 = vld [vmem:[%s549 + $0x10] sm:$0xf]
      %v555 = vld [vmem:[%s549 + $0x14] sm:$0xf]
      %v556 = vld [vmem:[%s549 + $0x18] sm:$0xf]
      %v557 = vld [vmem:[%s549 + $0x1c] sm:$0xf]
      %v558 = vld [vmem:[%s549 + $0x20] sm:$0xf]
      %v559 = vld [vmem:[%s549 + $0x24] sm:$0xf]
      %v560 = vld [vmem:[%s549 + $0x28] sm:$0xf]
      %v561 = vld [vmem:[%s549 + $0x2c] sm:$0xf]
      %v562 = vld [vmem:[%s549 + $0x30] sm:$0xf]
      %v563 = vld [vmem:[%s549 + $0x34] sm:$0xf]
      %v564 = vld [vmem:[%s549 + $0x38] sm:$0xf]
      %v565 = vld [vmem:[%s549 + $0x3c] sm:$0xf]
      %v582 = vunpack.c.l.b16 %v550
      %v583 = vunpack.c.l.b16 %v551
      %v584 = vunpack.c.l.b16 %v552
      %v585 = vunpack.c.l.b16 %v553
      %v586 = vunpack.c.l.b16 %v554
      %v587 = vunpack.c.l.b16 %v555
      %v588 = vunpack.c.l.b16 %v556
      %v589 = vunpack.c.l.b16 %v557
      %v590 = vunpack.c.l.b16 %v558
      %v591 = vunpack.c.l.b16 %v559
      %v592 = vunpack.c.l.b16 %v560
      %v593 = vunpack.c.l.b16 %v561
      %v594 = vunpack.c.l.b16 %v562
      %v595 = vunpack.c.l.b16 %v563
      %v596 = vunpack.c.l.b16 %v564
      %v597 = vunpack.c.l.b16 %v565
      %v598 = vpack.c.b16 %v583, %v582
      %v599 = vpack.c.b16 %v585, %v584
      %v600 = vpack.c.b16 %v587, %v586
      %v601 = vpack.c.b16 %v589, %v588
      %v602 = vpack.c.b16 %v591, %v590
      %v603 = vpack.c.b16 %v593, %v592
      %v604 = vpack.c.b16 %v595, %v594
      %v605 = vpack.c.b16 %v597, %v596
      %614 = vmatpush.bf16.msra.mxu0 %v605
      %615 = vmatpush.bf16.msra.mxu0 %v604
      %616 = vmatpush.bf16.msra.mxu0 %v603
      %617 = vmatpush.bf16.msra.mxu0 %v602
      %618 = vmatpush.bf16.msra.mxu0 %v601
      %619 = vmatpush.bf16.msra.mxu0 %v600
      %620 = vmatpush.bf16.msra.mxu0 %v599
      %621 = vmatpush.bf16.msra.mxu0 %v598
      %622 = vmatmul.bf16.gmra.mxu0 %v307
      %v623 = vpop.f32.mrf.mxu0
      %v624 = vadd.f32 0.0, %v623
      %v625 = vpop.f32.mrf.mxu0
      %v626 = vadd.f32 0.0, %v625
      %627 = vdwg.mxu0
      %v644 = vunpack.c.l.b16 %v533
      %v645 = vunpack.c.l.b16 %v534
      %v646 = vunpack.c.l.b16 %v535
      %v647 = vunpack.c.l.b16 %v536
      %v648 = vunpack.c.l.b16 %v537
      %v649 = vunpack.c.l.b16 %v538
      %v650 = vunpack.c.l.b16 %v539
      %v651 = vunpack.c.l.b16 %v540
      %v652 = vunpack.c.l.b16 %v541
      %v653 = vunpack.c.l.b16 %v542
      %v654 = vunpack.c.l.b16 %v543
      %v655 = vunpack.c.l.b16 %v544
      %v656 = vunpack.c.l.b16 %v545
      %v657 = vunpack.c.l.b16 %v546
      %v658 = vunpack.c.l.b16 %v547
      %v659 = vunpack.c.l.b16 %v548
      %v660 = vpack.c.b16 %v645, %v644
      %v661 = vpack.c.b16 %v647, %v646
      %v662 = vpack.c.b16 %v649, %v648
      %v663 = vpack.c.b16 %v651, %v650
      %v664 = vpack.c.b16 %v653, %v652
      %v665 = vpack.c.b16 %v655, %v654
      %v666 = vpack.c.b16 %v657, %v656
      %v667 = vpack.c.b16 %v659, %v658
      %676 = vmatpush.bf16.msra.mxu0 %v667
      %677 = vmatpush.bf16.msra.mxu0 %v666
      %678 = vmatpush.bf16.msra.mxu0 %v665
      %679 = vmatpush.bf16.msra.mxu0 %v664
      %680 = vmatpush.bf16.msra.mxu0 %v663
      %681 = vmatpush.bf16.msra.mxu0 %v662
      %682 = vmatpush.bf16.msra.mxu0 %v661
      %683 = vmatpush.bf16.msra.mxu0 %v660
      %684 = vmatmul.bf16.gmra.mxu0 %v531
      %v685 = vpop.f32.mrf.mxu0
      %v686 = vadd.f32 %v624, %v685
      %v687 = vpop.f32.mrf.mxu0
      %v688 = vadd.f32 %v626, %v687
      %689 = vdwg.mxu0
      %v690 = vld [vmem:[%s278 + $0x1] sm:$0x1]
      %v691 = vperm.slane %v690, 0
      %v692 = vadd.f32 %v686, %v691
      %v693 = vadd.f32 %v688, %v691
      %v694 = vmax.f32 %v692, 0.0
      %v695 = vmax.f32 %v693, 0.0
      %v696 = vpack.c.bf16 %v694, %v694
      %v697 = vpack.c.bf16 %v695, %v695
      %698 = vst [vmem:[%s7] sm:$0xf] %v696
      %699 = vst [vmem:[%s7 + $0x4] sm:$0xf] %v697
      // Predicated region
      $region49: #{gnn_encoder_forward.1} parent=43 // pred_check
        %p700 = pneg %p168
      $region50: #{gnn_encoder_forward.1} parent=43 // pred_check_branch
        %702 = sbr.rel (%p700) target = $region52
      $region51: #{gnn_encoder_forward.1} parent=43 // pred_region
        _
      $region52: #{gnn_encoder_forward.1} parent=43 // pred_fallthru
        _
      // Predicated region
      $region53: #{gnn_encoder_forward.1} parent=43 // pred_check
        %p703 = pneg %p189
      $region54: #{gnn_encoder_forward.1} parent=43 // pred_check_branch
        %705 = sbr.rel (%p703) target = $region56
      $region55: #{gnn_encoder_forward.1} parent=43 // pred_region
        _
      $region56: #{gnn_encoder_forward.1} parent=43 // pred_fallthru
        _
      // Predicated region
      $region57: #{gnn_encoder_forward.1} parent=43 // pred_check
        %p706 = pneg %p168
      $region58: #{gnn_encoder_forward.1} parent=43 // pred_check_branch
        %708 = sbr.rel (%p706) target = $region60
      $region59: #{gnn_encoder_forward.1} parent=43 // pred_region
        _
      $region60: #{gnn_encoder_forward.1} parent=43 // pred_fallthru
        _
      // Predicated region
      $region61: #{gnn_encoder_forward.1} parent=43 // pred_check
        %p709 = pneg %p189
      $region62: #{gnn_encoder_forward.1} parent=43 // pred_check_branch
        %711 = sbr.rel (%p709) target = $region64
      $region63: #{gnn_encoder_forward.1} parent=43 // pred_region
        _
      $region64: #{gnn_encoder_forward.1} parent=43 // pred_fallthru
        _
    $region44: #{gnn_encoder_forward.1} parent=5 // pred_fallthru
      _
    %p712 = scmp.le.s32.totalorder 2, %s14
    // Predicated region
    $region65: #{gnn_encoder_forward.1} parent=5 // pred_check
      %p713 = pneg %p712
    $region66: #{gnn_encoder_forward.1} parent=5 // pred_check_branch
      %715 = sbr.rel (%p713) target = $region68
    $region67: #{gnn_encoder_forward.1} parent=5 // pred_region
      %s716 = ssub.s32 %s14, 2
    $region68: #{gnn_encoder_forward.1} parent=5 // pred_fallthru
      _
  $region6: #{gnn_encoder_forward.1} parent=0 // loop_footer
    %s18 = sadd.s32 1, %s14
  $region7: #{gnn_encoder_forward.1} parent=0 // loop_footer_branch
    %13 = sbr.rel target = $region3
  $region8: #{gnn_encoder_forward.1} parent=0 // loop_exit
    _

</llo_original>
